<compile_context>
chip_gen: v6e
topology: v6e:2x2x1
jax: 0.10.0
libtpu: 0.0.40
codegen_flags: <defaults>
</compile_context>

<pallas_src>
import functools

import numpy as np
import jax
import jax.numpy as jnp
from jax import lax
from jax.experimental import pallas as pl
from jax.experimental.pallas import tpu as pltpu

SEQ_LEN = 256   # the hard-coded "256" in the padding formula forces L == 256
EPS = 1e-5      # nn.BatchNorm1d default eps


def _round_up(n, m):
    return (n + m - 1) // m * m


def _dims(kernels, c_in, c_out, batch):
    nk = len(kernels)
    ctot = c_out * nk
    cpad = max(c_in, c_out)
    while (batch * cpad) % 8:           # keep batch*channel row blocks 8-aligned
        cpad += 1
    ctot_pad = _round_up(ctot, 8)
    cb = batch * cpad                   # activation rows (b*cpad + c)
    ob = batch * ctot_pad               # conv-cat rows   (b*ctot_pad + c)
    taps = int(sum(kernels))
    return dict(nk=nk, ctot=ctot, cpad=cpad, ctot_pad=ctot_pad,
                cb=cb, ob=ob, taps=taps, kdim=taps * cb)


# ----------------------------- Pallas kernel --------------------------------
def _make_kernel(kernels, num_layers, batch, cpad, ctot_pad):
    """Fused forward of `num_layers` MSCNN_BLOCKs in (B*Cpad, 256) layout."""
    L = SEQ_LEN
    cb = batch * cpad
    ob = batch * ctot_pad
    inv_n = 1.0 / float(batch * L)

    def _gather_pieces(x, xb):
        """im2col: one (cb, L) slab per (branch, tap), stride-k window taps.

        Selection matrices are built in-register (iota + compare), so the MXU
        only streams activations against small, band-restricted 0/1 weights."""
        pieces = []
        for k in kernels:
            pad = 256 * (k - 1) // 2
            if k == 1:                          # identity tap: exact f32 copy
                pieces.append(x)
            elif 128 % k == 0:
                # Fast path (k | 128): all k taps are valid on the same
                # contiguous output band [t0, t0+n); fuse them into ONE dot.
                t0, n = pad // k, L // k
                cols = []
                for j in range(k):
                    s = lax.broadcasted_iota(jnp.int32, (L, n), 0)   # source idx
                    t = lax.broadcasted_iota(jnp.int32, (L, n), 1)   # band col
                    cols.append(jnp.where(s == k * (t + t0) + (j - pad), 1.0, 0.0))
                g = jnp.concatenate(cols, axis=1).astype(jnp.bfloat16)   # (L, k*n)
                r = jnp.dot(xb, g, preferred_element_type=jnp.float32)   # (cb, k*n)
                zl = jnp.zeros((cb, t0), jnp.float32)
                zr = jnp.zeros((cb, L - t0 - n), jnp.float32)
                for j in range(k):
                    pieces.append(jnp.concatenate(
                        [zl, r[:, j * n:(j + 1) * n], zr], axis=1))
            else:
                # General k (odd strides, partial windows): one full-width
                # selection matrix per tap, still generated in-kernel.
                for j in range(k):
                    s = lax.broadcasted_iota(jnp.int32, (L, L), 0)
                    t = lax.broadcasted_iota(jnp.int32, (L, L), 1)
                    g = jnp.where(s == k * t + (j - pad), 1.0, 0.0)
                    g = g.astype(jnp.bfloat16)
                    pieces.append(jnp.dot(xb, g,
                                          preferred_element_type=jnp.float32))
        return pieces

    def kernel(x_ref, wblk_ref, bias_ref, gamma_ref, beta_ref, wproj_ref, bp_ref,
               y_ref, res_ref):
        x = x_ref[...]                                   # (cb, L) f32, lane-dense
        for l in range(num_layers):
            xb = x.astype(jnp.bfloat16)                  # bf16 for im2col dots only
            pat = jnp.concatenate(_gather_pieces(x, xb), axis=0)   # (taps*cb, L)

            # ---- every conv branch of every batch element: ONE block-diag dot
            o = jnp.dot(wblk_ref[l], pat,
                        preferred_element_type=jnp.float32) + bias_ref[l]  # (ob, L)

            # ---- BatchNorm1d (training-mode stats, two-pass centered variance)
            s1 = jnp.sum(o, axis=1, keepdims=True)                         # (ob, 1)
            csum = sum(s1[b * ctot_pad:(b + 1) * ctot_pad] for b in range(batch))
            mean = csum * inv_n                                            # (ctot_pad,1)
            mean_t = jnp.concatenate([mean] * batch, axis=0)               # (ob, 1)
            d = o - mean_t
            s2 = jnp.sum(d * d, axis=1, keepdims=True)
            vsum = sum(s2[b * ctot_pad:(b + 1) * ctot_pad] for b in range(batch))
            var = vsum * inv_n
            scale = gamma_ref[l] * lax.rsqrt(var + EPS)                    # (ctot_pad,1)
            scale_t = jnp.concatenate([scale] * batch, axis=0)
            beta_t = jnp.concatenate([beta_ref[l]] * batch, axis=0)
            h = jnp.maximum(d * scale_t + beta_t, 0.0)                     # ReLU

            # ---- 1x1 projection (block-diagonal over batch)
            y = jnp.dot(wproj_ref[l], h,
                        preferred_element_type=jnp.float32) + bp_ref[l]    # (cb, L)

            if l == num_layers - 1:
                res_ref[...] = o          # concatenated pre-BN conv outputs
                y_ref[...] = y
            else:
                x = y                     # activation stays in vregs between layers

    return kernel


# ------------------------- wrapper-side packing ------------------------------
def pack_mscnn_params(layer_params, kernels, c_in, c_out, batch):
    """Eager (numpy) packing of module params into kernel operands.

    Call OUTSIDE jit: weights are static, so the packing never replays per call."""
    num_layers = len(layer_params)
    if num_layers > 1:
        assert c_in == c_out, "stacked blocks need in_channel == out_channel"
    d = _dims(kernels, c_in, c_out, batch)
    cpad, ctot_pad, cb, ob = d["cpad"], d["ctot_pad"], d["cb"], d["ob"]
    kdim, ctot = d["kdim"], d["ctot"]

    wblk_l, bias_l, gamma_l, beta_l, wproj_l, bp_l = [], [], [], [], [], []
    for li, (conv_w, conv_b, gamma, beta, wp, bp) in enumerate(layer_params):
        ci = c_in if li == 0 else c_out
        wblk = np.zeros((ob, kdim), np.float32)
        tap = 0
        for i, k in enumerate(kernels):
            w = np.asarray(conv_w[i], np.float32)            # (c_out, ci, k)
            for j in range(k):
                for b in range(batch):
                    r0 = b * ctot_pad + i * c_out
                    c0 = tap * cb + b * cpad
                    wblk[r0:r0 + c_out, c0:c0 + ci] = w[:, :, j]
                tap += 1

        cat_b = np.concatenate([np.asarray(v, np.float32) for v in conv_b])
        bias = np.zeros((ob, 1), np.float32)
        gam = np.zeros((ctot_pad, 1), np.float32)
        bet = np.zeros((ctot_pad, 1), np.float32)
        gam[:ctot, 0] = np.asarray(gamma, np.float32)
        bet[:ctot, 0] = np.asarray(beta, np.float32)
        wproj = np.zeros((cb, ob), np.float32)
        bpv = np.zeros((cb, 1), np.float32)
        for b in range(batch):
            bias[b * ctot_pad:b * ctot_pad + ctot, 0] = cat_b
            wproj[b * cpad:b * cpad + c_out,
                  b * ctot_pad:b * ctot_pad + ctot] = np.asarray(wp, np.float32)
            bpv[b * cpad:b * cpad + c_out, 0] = np.asarray(bp, np.float32)

        wblk_l.append(wblk); bias_l.append(bias); gamma_l.append(gam)
        beta_l.append(bet); wproj_l.append(wproj); bp_l.append(bpv)

    return tuple(jnp.asarray(np.stack(a)) for a in
                 (wblk_l, bias_l, gamma_l, beta_l, wproj_l, bp_l))


# ------------------------------ JAX wrapper ----------------------------------
def mscnn_forward(x, packed, *, kernels, c_in, c_out):
    """Forward of (a stack of) MSCNN_BLOCKs fused into ONE pallas_call.

    x: (B, c_in, 256).  Returns (y (B, c_out, 256), [last layer's conv outs])."""
    batch, xc, L = x.shape
    assert xc == c_in and L == SEQ_LEN, "padding 256*(k-1)//2 requires L == 256"
    d = _dims(kernels, c_in, c_out, batch)
    cpad, ctot_pad, cb, ob = d["cpad"], d["ctot_pad"], d["cb"], d["ob"]
    kdim, ctot, nk = d["kdim"], d["ctot"], d["nk"]

    wblk, bias, gamma, beta, wproj, bp = packed
    num_layers = wblk.shape[0]
    assert wblk.shape == (num_layers, ob, kdim)

    # (B, C, L) -> lane-dense (B*cpad, L): channels/batch on sublanes, L on lanes
    x0 = jnp.pad(x, ((0, 0), (0, cpad - c_in), (0, 0))).reshape(cb, L)

    # advisory cost estimate so XLA can schedule around the ~us-scale call
    gflops = 0
    for k in kernels:
        if k > 1:
            gflops += 2 * cb * L * L * (1 if 128 % k == 0 else k)
    flops = num_layers * (gflops + 2 * ob * kdim * L + 2 * cb * ob * L + 12 * ob * L)
    bytes_acc = 4 * (int(x0.size) + sum(int(p.size) for p in packed) + (cb + ob) * L)
    cost = pl.CostEstimate(flops=int(flops),
                           transcendentals=int(num_layers * ctot_pad),
                           bytes_accessed=int(bytes_acc))

    y_flat, res_flat = pl.pallas_call(
        _make_kernel(kernels, num_layers, batch, cpad, ctot_pad),
        out_shape=(jax.ShapeDtypeStruct((cb, L), jnp.float32),
                   jax.ShapeDtypeStruct((ob, L), jnp.float32)),
        in_specs=[pl.BlockSpec(memory_space=pltpu.MemorySpace.VMEM)] * 7,
        out_specs=(pl.BlockSpec(memory_space=pltpu.MemorySpace.VMEM),
                   pl.BlockSpec(memory_space=pltpu.MemorySpace.VMEM)),
        cost_estimate=cost,
    )(x0, wblk, bias, gamma, beta, wproj, bp)

    y = y_flat.reshape(batch, cpad, L)[:, :c_out]
    res_all = res_flat.reshape(batch, ctot_pad, L)[:, :ctot]
    res = [res_all[:, i * c_out:(i + 1) * c_out] for i in range(nk)]
    return y, res


# ------------------------- pure-JAX reference (check) ------------------------
def _block_reference(x, params, kernels):
    conv_w, conv_b, gamma, beta, wp, bp = params
    outs = []
    for i, k in enumerate(kernels):
        p = 256 * (k - 1) // 2
        o = lax.conv_general_dilated(x, conv_w[i], window_strides=(k,),
                                     padding=[(p, p)],
                                     dimension_numbers=('NCH', 'OIH', 'NCH'))
        outs.append(o + conv_b[i][None, :, None])
    cat = jnp.concatenate(outs, axis=1)
    mean = cat.mean(axis=(0, 2), keepdims=True)
    var = ((cat - mean) ** 2).mean(axis=(0, 2), keepdims=True)
    h = (cat - mean) / jnp.sqrt(var + EPS) * gamma[None, :, None] + beta[None, :, None]
    h = jnp.maximum(h, 0.0)
    y = lax.conv_general_dilated(h, wp[:, :, None], window_strides=(1,),
                                 padding=[(0, 0)],
                                 dimension_numbers=('NCH', 'OIH', 'NCH'))
    return y + bp[None, :, None], outs


def _net_reference(x, layer_params, kernels):
    res = None
    for params in layer_params:
        x, res = _block_reference(x, params, kernels)
    return x, res


# ------------------------------ parameter init -------------------------------
def init_block_params(key, c_in, c_out, kernels):
    nk = len(kernels)
    keys = jax.random.split(key, 2 * nk + 4)
    conv_w, conv_b = [], []
    for i, k in enumerate(kernels):
        fan_in = c_in * k
        conv_w.append(jax.random.normal(keys[2 * i], (c_out, c_in, k), jnp.float32)
                      / jnp.sqrt(float(fan_in)))
        conv_b.append(0.1 * jax.random.normal(keys[2 * i + 1], (c_out,), jnp.float32))
    ctot = c_out * nk
    gamma = 1.0 + 0.1 * jax.random.normal(keys[2 * nk], (ctot,), jnp.float32)
    beta = 0.1 * jax.random.normal(keys[2 * nk + 1], (ctot,), jnp.float32)
    wp = jax.random.normal(keys[2 * nk + 2], (c_out, ctot), jnp.float32) / jnp.sqrt(float(ctot))
    bp = 0.1 * jax.random.normal(keys[2 * nk + 3], (c_out,), jnp.float32)
    return conv_w, conv_b, gamma, beta, wp, bp


# ----------------------------------- main -------------------------------------
if __name__ == "__main__":
    B = 2
    IN_CH = 4            # in_channel == out_channel so blocks can stack
    OUT_CH = 4
    KERNELS = (1, 2, 4)
    NUM_LAYERS = 2
    L = SEQ_LEN          # forced to 256 by the module's padding formula

    key = jax.random.PRNGKey(0)
    kx, *layer_keys = jax.random.split(key, 1 + NUM_LAYERS)
    x = jax.random.normal(kx, (B, IN_CH, L), jnp.float32)
    layer_params = [init_block_params(lk, IN_CH, OUT_CH, KERNELS)
                    for lk in layer_keys]

    fwd = jax.jit(functools.partial(mscnn_forward, kernels=KERNELS,
                                    c_in=IN_CH, c_out=OUT_CH))

    # Tolerance reflects bf16 rounding of the activations in the im2col matmuls
    # (selection masks are exact); structural errors would be O(1).
    TOL = dict(atol=3e-2, rtol=3e-2)

    # ---- single MSCNN_BLOCK (exact module semantics) ----
    packed1 = pack_mscnn_params(layer_params[:1], KERNELS, IN_CH, OUT_CH, B)
    y1, out1 = fwd(x, packed1)
    y1 = jax.block_until_ready(y1)
    out1 = [jax.block_until_ready(o) for o in out1]
    y1_ref, out1_ref = _block_reference(x, layer_params[0], KERNELS)
    assert y1.shape == (B, OUT_CH, L)
    assert len(out1) == len(KERNELS)
    assert jnp.allclose(y1, y1_ref, **TOL)
    for a, b in zip(out1, out1_ref):
        assert a.shape == (B, OUT_CH, L)
        assert jnp.allclose(a, b, **TOL)

    # ---- stacked blocks, all layers fused into ONE pallas_call ----
    packed = pack_mscnn_params(layer_params, KERNELS, IN_CH, OUT_CH, B)
    y, res = fwd(x, packed)
    y = jax.block_until_ready(y)
    res = [jax.block_until_ready(r) for r in res]
    y_ref, res_ref = _net_reference(x, layer_params, KERNELS)
    assert y.shape == (B, OUT_CH, L)
    assert jnp.allclose(y, y_ref, **TOL)
    for a, b in zip(res, res_ref):
        assert a.shape == (B, OUT_CH, L)
        assert jnp.allclose(a, b, **TOL)

    print("KERNEL_OK")
</pallas_src>

<mosaic_0001>
module attributes {stable_mosaic.version = 11 : i64} {
  func.func @kernel(%arg0: memref<8x256xf32, #tpu.memory_space<vmem>>, %arg1: memref<1x32x56xf32, #tpu.memory_space<vmem>>, %arg2: memref<1x32x1xf32, #tpu.memory_space<vmem>>, %arg3: memref<1x16x1xf32, #tpu.memory_space<vmem>>, %arg4: memref<1x16x1xf32, #tpu.memory_space<vmem>>, %arg5: memref<1x8x32xf32, #tpu.memory_space<vmem>>, %arg6: memref<1x8x1xf32, #tpu.memory_space<vmem>>, %arg7: memref<8x256xf32, #tpu.memory_space<vmem>>, %arg8: memref<32x256xf32, #tpu.memory_space<vmem>>) attributes {dimension_semantics = [], scalar_prefetch = 0 : i64, scratch_operands = 0 : i64, tpu.core_type = #tpu.core_type<tc>} {
    %c0 = arith.constant 0 : index
    %c0_0 = arith.constant 0 : index
    %0 = vector.load %arg0[%c0, %c0_0] : memref<8x256xf32, #tpu.memory_space<vmem>>, vector<8x256xf32>
    %1 = arith.truncf %0 : vector<8x256xf32> to vector<8x256xbf16>
    %2 = tpu.iota {dimensions = array<i32: 0>} : vector<256x128xi32>
    %3 = tpu.iota {dimensions = array<i32: 1>} : vector<256x128xi32>
    %c64_i32 = arith.constant 64 : i32
    %4 = vector.broadcast %c64_i32 : i32 to vector<256x128xi32>
    %5 = arith.addi %3, %4 : vector<256x128xi32>
    %c2_i32 = arith.constant 2 : i32
    %6 = vector.broadcast %c2_i32 : i32 to vector<256x128xi32>
    %7 = arith.muli %6, %5 : vector<256x128xi32>
    %c-128_i32 = arith.constant -128 : i32
    %8 = vector.broadcast %c-128_i32 : i32 to vector<256x128xi32>
    %9 = arith.addi %7, %8 : vector<256x128xi32>
    %10 = arith.cmpi eq, %2, %9 : vector<256x128xi32>
    %cst = arith.constant 1.000000e+00 : f32
    %cst_1 = arith.constant 0.000000e+00 : f32
    %11 = vector.broadcast %cst : f32 to vector<256x128xf32>
    %12 = vector.broadcast %cst_1 : f32 to vector<256x128xf32>
    %13 = arith.select %10, %11, %12 : vector<256x128xi1>, vector<256x128xf32>
    %14 = tpu.iota {dimensions = array<i32: 0>} : vector<256x128xi32>
    %15 = tpu.iota {dimensions = array<i32: 1>} : vector<256x128xi32>
    %c64_i32_2 = arith.constant 64 : i32
    %16 = vector.broadcast %c64_i32_2 : i32 to vector<256x128xi32>
    %17 = arith.addi %15, %16 : vector<256x128xi32>
    %c2_i32_3 = arith.constant 2 : i32
    %18 = vector.broadcast %c2_i32_3 : i32 to vector<256x128xi32>
    %19 = arith.muli %18, %17 : vector<256x128xi32>
    %c-127_i32 = arith.constant -127 : i32
    %20 = vector.broadcast %c-127_i32 : i32 to vector<256x128xi32>
    %21 = arith.addi %19, %20 : vector<256x128xi32>
    %22 = arith.cmpi eq, %14, %21 : vector<256x128xi32>
    %cst_4 = arith.constant 1.000000e+00 : f32
    %cst_5 = arith.constant 0.000000e+00 : f32
    %23 = vector.broadcast %cst_4 : f32 to vector<256x128xf32>
    %24 = vector.broadcast %cst_5 : f32 to vector<256x128xf32>
    %25 = arith.select %22, %23, %24 : vector<256x128xi1>, vector<256x128xf32>
    %26 = tpu.concatenate %13, %25 in 1 : vector<256x128xf32>, vector<256x128xf32> -> vector<256x256xf32>
    %27 = arith.truncf %26 : vector<256x256xf32> to vector<256x256xbf16>
    %cst_6 = arith.constant dense<0.000000e+00> : vector<8x256xf32>
    %28 = tpu.matmul %1, %27, %cst_6 {dimension_numbers = #tpu.dot_dimension_numbers<[1], [0], [0], [1], [0, 0, 1, 1], [], []>} : vector<8x256xbf16>, vector<256x256xbf16>, vector<8x256xf32> -> vector<8x256xf32>
    %cst_7 = arith.constant 0.000000e+00 : f32
    %29 = vector.broadcast %cst_7 : f32 to vector<8x64xf32>
    %cst_8 = arith.constant 0.000000e+00 : f32
    %30 = vector.broadcast %cst_8 : f32 to vector<8x64xf32>
    %31 = vector.extract_strided_slice %28 {offsets = [0, 0], sizes = [8, 128], strides = [1, 1]} : vector<8x256xf32> to vector<8x128xf32>
    %32 = tpu.concatenate %29, %31, %30 in 1 : vector<8x64xf32>, vector<8x128xf32>, vector<8x64xf32> -> vector<8x256xf32>
    %33 = vector.extract_strided_slice %28 {offsets = [0, 128], sizes = [8, 128], strides = [1, 1]} : vector<8x256xf32> to vector<8x128xf32>
    %34 = tpu.concatenate %29, %33, %30 in 1 : vector<8x64xf32>, vector<8x128xf32>, vector<8x64xf32> -> vector<8x256xf32>
    %35 = tpu.iota {dimensions = array<i32: 0>} : vector<256x64xi32>
    %36 = tpu.iota {dimensions = array<i32: 1>} : vector<256x64xi32>
    %c96_i32 = arith.constant 96 : i32
    %37 = vector.broadcast %c96_i32 : i32 to vector<256x64xi32>
    %38 = arith.addi %36, %37 : vector<256x64xi32>
    %c4_i32 = arith.constant 4 : i32
    %39 = vector.broadcast %c4_i32 : i32 to vector<256x64xi32>
    %40 = arith.muli %39, %38 : vector<256x64xi32>
    %c-384_i32 = arith.constant -384 : i32
    %41 = vector.broadcast %c-384_i32 : i32 to vector<256x64xi32>
    %42 = arith.addi %40, %41 : vector<256x64xi32>
    %43 = arith.cmpi eq, %35, %42 : vector<256x64xi32>
    %cst_9 = arith.constant 1.000000e+00 : f32
    %cst_10 = arith.constant 0.000000e+00 : f32
    %44 = vector.broadcast %cst_9 : f32 to vector<256x64xf32>
    %45 = vector.broadcast %cst_10 : f32 to vector<256x64xf32>
    %46 = arith.select %43, %44, %45 : vector<256x64xi1>, vector<256x64xf32>
    %47 = tpu.iota {dimensions = array<i32: 0>} : vector<256x64xi32>
    %48 = tpu.iota {dimensions = array<i32: 1>} : vector<256x64xi32>
    %c96_i32_11 = arith.constant 96 : i32
    %49 = vector.broadcast %c96_i32_11 : i32 to vector<256x64xi32>
    %50 = arith.addi %48, %49 : vector<256x64xi32>
    %c4_i32_12 = arith.constant 4 : i32
    %51 = vector.broadcast %c4_i32_12 : i32 to vector<256x64xi32>
    %52 = arith.muli %51, %50 : vector<256x64xi32>
    %c-383_i32 = arith.constant -383 : i32
    %53 = vector.broadcast %c-383_i32 : i32 to vector<256x64xi32>
    %54 = arith.addi %52, %53 : vector<256x64xi32>
    %55 = arith.cmpi eq, %47, %54 : vector<256x64xi32>
    %cst_13 = arith.constant 1.000000e+00 : f32
    %cst_14 = arith.constant 0.000000e+00 : f32
    %56 = vector.broadcast %cst_13 : f32 to vector<256x64xf32>
    %57 = vector.broadcast %cst_14 : f32 to vector<256x64xf32>
    %58 = arith.select %55, %56, %57 : vector<256x64xi1>, vector<256x64xf32>
    %59 = tpu.iota {dimensions = array<i32: 0>} : vector<256x64xi32>
    %60 = tpu.iota {dimensions = array<i32: 1>} : vector<256x64xi32>
    %c96_i32_15 = arith.constant 96 : i32
    %61 = vector.broadcast %c96_i32_15 : i32 to vector<256x64xi32>
    %62 = arith.addi %60, %61 : vector<256x64xi32>
    %c4_i32_16 = arith.constant 4 : i32
    %63 = vector.broadcast %c4_i32_16 : i32 to vector<256x64xi32>
    %64 = arith.muli %63, %62 : vector<256x64xi32>
    %c-382_i32 = arith.constant -382 : i32
    %65 = vector.broadcast %c-382_i32 : i32 to vector<256x64xi32>
    %66 = arith.addi %64, %65 : vector<256x64xi32>
    %67 = arith.cmpi eq, %59, %66 : vector<256x64xi32>
    %cst_17 = arith.constant 1.000000e+00 : f32
    %cst_18 = arith.constant 0.000000e+00 : f32
    %68 = vector.broadcast %cst_17 : f32 to vector<256x64xf32>
    %69 = vector.broadcast %cst_18 : f32 to vector<256x64xf32>
    %70 = arith.select %67, %68, %69 : vector<256x64xi1>, vector<256x64xf32>
    %71 = tpu.iota {dimensions = array<i32: 0>} : vector<256x64xi32>
    %72 = tpu.iota {dimensions = array<i32: 1>} : vector<256x64xi32>
    %c96_i32_19 = arith.constant 96 : i32
    %73 = vector.broadcast %c96_i32_19 : i32 to vector<256x64xi32>
    %74 = arith.addi %72, %73 : vector<256x64xi32>
    %c4_i32_20 = arith.constant 4 : i32
    %75 = vector.broadcast %c4_i32_20 : i32 to vector<256x64xi32>
    %76 = arith.muli %75, %74 : vector<256x64xi32>
    %c-381_i32 = arith.constant -381 : i32
    %77 = vector.broadcast %c-381_i32 : i32 to vector<256x64xi32>
    %78 = arith.addi %76, %77 : vector<256x64xi32>
    %79 = arith.cmpi eq, %71, %78 : vector<256x64xi32>
    %cst_21 = arith.constant 1.000000e+00 : f32
    %cst_22 = arith.constant 0.000000e+00 : f32
    %80 = vector.broadcast %cst_21 : f32 to vector<256x64xf32>
    %81 = vector.broadcast %cst_22 : f32 to vector<256x64xf32>
    %82 = arith.select %79, %80, %81 : vector<256x64xi1>, vector<256x64xf32>
    %83 = tpu.concatenate %46, %58, %70, %82 in 1 : vector<256x64xf32>, vector<256x64xf32>, vector<256x64xf32>, vector<256x64xf32> -> vector<256x256xf32>
    %84 = arith.truncf %83 : vector<256x256xf32> to vector<256x256xbf16>
    %cst_23 = arith.constant dense<0.000000e+00> : vector<8x256xf32>
    %85 = tpu.matmul %1, %84, %cst_23 {dimension_numbers = #tpu.dot_dimension_numbers<[1], [0], [0], [1], [0, 0, 1, 1], [], []>} : vector<8x256xbf16>, vector<256x256xbf16>, vector<8x256xf32> -> vector<8x256xf32>
    %cst_24 = arith.constant 0.000000e+00 : f32
    %86 = vector.broadcast %cst_24 : f32 to vector<8x96xf32>
    %cst_25 = arith.constant 0.000000e+00 : f32
    %87 = vector.broadcast %cst_25 : f32 to vector<8x96xf32>
    %88 = vector.extract_strided_slice %85 {offsets = [0, 0], sizes = [8, 64], strides = [1, 1]} : vector<8x256xf32> to vector<8x64xf32>
    %89 = tpu.concatenate %86, %88, %87 in 1 : vector<8x96xf32>, vector<8x64xf32>, vector<8x96xf32> -> vector<8x256xf32>
    %90 = vector.extract_strided_slice %85 {offsets = [0, 64], sizes = [8, 64], strides = [1, 1]} : vector<8x256xf32> to vector<8x64xf32>
    %91 = tpu.concatenate %86, %90, %87 in 1 : vector<8x96xf32>, vector<8x64xf32>, vector<8x96xf32> -> vector<8x256xf32>
    %92 = vector.extract_strided_slice %85 {offsets = [0, 128], sizes = [8, 64], strides = [1, 1]} : vector<8x256xf32> to vector<8x64xf32>
    %93 = tpu.concatenate %86, %92, %87 in 1 : vector<8x96xf32>, vector<8x64xf32>, vector<8x96xf32> -> vector<8x256xf32>
    %94 = vector.extract_strided_slice %85 {offsets = [0, 192], sizes = [8, 64], strides = [1, 1]} : vector<8x256xf32> to vector<8x64xf32>
    %95 = tpu.concatenate %86, %94, %87 in 1 : vector<8x96xf32>, vector<8x64xf32>, vector<8x96xf32> -> vector<8x256xf32>
    %96 = tpu.concatenate %0, %32, %34, %89, %91, %93, %95 in 0 : vector<8x256xf32>, vector<8x256xf32>, vector<8x256xf32>, vector<8x256xf32>, vector<8x256xf32>, vector<8x256xf32>, vector<8x256xf32> -> vector<56x256xf32>
    %c0_26 = arith.constant 0 : index
    %c0_27 = arith.constant 0 : index
    %c0_28 = arith.constant 0 : index
    %97 = vector.load %arg1[%c0_26, %c0_27, %c0_28] : memref<1x32x56xf32, #tpu.memory_space<vmem>>, vector<1x32x56xf32>
    %98 = vector.shape_cast %97 : vector<1x32x56xf32> to vector<32x56xf32>
    %cst_29 = arith.constant dense<0.000000e+00> : vector<32x256xf32>
    %99 = tpu.matmul %98, %96, %cst_29 {dimension_numbers = #tpu.dot_dimension_numbers<[1], [0], [0], [1], [0, 0, 1, 1], [], []>} : vector<32x56xf32>, vector<56x256xf32>, vector<32x256xf32> -> vector<32x256xf32>
    %c0_30 = arith.constant 0 : index
    %c0_31 = arith.constant 0 : index
    %c0_32 = arith.constant 0 : index
    %100 = vector.load %arg2[%c0_30, %c0_31, %c0_32] : memref<1x32x1xf32, #tpu.memory_space<vmem>>, vector<1x32x1xf32>
    %101 = vector.shape_cast %100 : vector<1x32x1xf32> to vector<32x1xf32>
    %102 = vector.broadcast %101 : vector<32x1xf32> to vector<32x256xf32>
    %103 = arith.addf %99, %102 : vector<32x256xf32>
    %cst_33 = arith.constant dense<0.000000e+00> : vector<32xf32>
    %104 = vector.multi_reduction <add>, %103, %cst_33 [1] : vector<32x256xf32> to vector<32xf32>
    %105 = vector.shape_cast %104 : vector<32xf32> to vector<32x1xf32>
    %106 = vector.extract_strided_slice %105 {offsets = [0, 0], sizes = [16, 1], strides = [1, 1]} : vector<32x1xf32> to vector<16x1xf32>
    %cst_34 = arith.constant 0.000000e+00 : f32
    %107 = vector.broadcast %cst_34 : f32 to vector<16x1xf32>
    %108 = arith.addf %107, %106 : vector<16x1xf32>
    %109 = vector.extract_strided_slice %105 {offsets = [16, 0], sizes = [16, 1], strides = [1, 1]} : vector<32x1xf32> to vector<16x1xf32>
    %110 = arith.addf %108, %109 : vector<16x1xf32>
    %cst_35 = arith.constant 0.001953125 : f32
    %111 = vector.broadcast %cst_35 : f32 to vector<16x1xf32>
    %112 = arith.mulf %110, %111 : vector<16x1xf32>
    %113 = tpu.concatenate %112, %112 in 0 : vector<16x1xf32>, vector<16x1xf32> -> vector<32x1xf32>
    %114 = vector.broadcast %113 : vector<32x1xf32> to vector<32x256xf32>
    %115 = arith.subf %103, %114 : vector<32x256xf32>
    %116 = arith.mulf %115, %115 : vector<32x256xf32>
    %cst_36 = arith.constant dense<0.000000e+00> : vector<32xf32>
    %117 = vector.multi_reduction <add>, %116, %cst_36 [1] : vector<32x256xf32> to vector<32xf32>
    %118 = vector.shape_cast %117 : vector<32xf32> to vector<32x1xf32>
    %119 = vector.extract_strided_slice %118 {offsets = [0, 0], sizes = [16, 1], strides = [1, 1]} : vector<32x1xf32> to vector<16x1xf32>
    %cst_37 = arith.constant 0.000000e+00 : f32
    %120 = vector.broadcast %cst_37 : f32 to vector<16x1xf32>
    %121 = arith.addf %120, %119 : vector<16x1xf32>
    %122 = vector.extract_strided_slice %118 {offsets = [16, 0], sizes = [16, 1], strides = [1, 1]} : vector<32x1xf32> to vector<16x1xf32>
    %123 = arith.addf %121, %122 : vector<16x1xf32>
    %cst_38 = arith.constant 0.001953125 : f32
    %124 = vector.broadcast %cst_38 : f32 to vector<16x1xf32>
    %125 = arith.mulf %123, %124 : vector<16x1xf32>
    %c0_39 = arith.constant 0 : index
    %c0_40 = arith.constant 0 : index
    %c0_41 = arith.constant 0 : index
    %126 = vector.load %arg3[%c0_39, %c0_40, %c0_41] : memref<1x16x1xf32, #tpu.memory_space<vmem>>, vector<1x16x1xf32>
    %127 = vector.shape_cast %126 : vector<1x16x1xf32> to vector<16x1xf32>
    %cst_42 = arith.constant 9.99999974E-6 : f32
    %128 = vector.broadcast %cst_42 : f32 to vector<16x1xf32>
    %129 = arith.addf %125, %128 : vector<16x1xf32>
    %130 = math.rsqrt %129 : vector<16x1xf32>
    %131 = arith.mulf %127, %130 : vector<16x1xf32>
    %132 = tpu.concatenate %131, %131 in 0 : vector<16x1xf32>, vector<16x1xf32> -> vector<32x1xf32>
    %c0_43 = arith.constant 0 : index
    %c0_44 = arith.constant 0 : index
    %c0_45 = arith.constant 0 : index
    %133 = vector.load %arg4[%c0_43, %c0_44, %c0_45] : memref<1x16x1xf32, #tpu.memory_space<vmem>>, vector<1x16x1xf32>
    %134 = vector.shape_cast %133 : vector<1x16x1xf32> to vector<16x1xf32>
    %135 = tpu.concatenate %134, %134 in 0 : vector<16x1xf32>, vector<16x1xf32> -> vector<32x1xf32>
    %136 = vector.broadcast %132 : vector<32x1xf32> to vector<32x256xf32>
    %137 = arith.mulf %115, %136 : vector<32x256xf32>
    %138 = vector.broadcast %135 : vector<32x1xf32> to vector<32x256xf32>
    %139 = arith.addf %137, %138 : vector<32x256xf32>
    %cst_46 = arith.constant 0.000000e+00 : f32
    %140 = vector.broadcast %cst_46 : f32 to vector<32x256xf32>
    %141 = arith.maximumf %139, %140 : vector<32x256xf32>
    %c0_47 = arith.constant 0 : index
    %c0_48 = arith.constant 0 : index
    %c0_49 = arith.constant 0 : index
    %142 = vector.load %arg5[%c0_47, %c0_48, %c0_49] : memref<1x8x32xf32, #tpu.memory_space<vmem>>, vector<1x8x32xf32>
    %143 = vector.shape_cast %142 : vector<1x8x32xf32> to vector<8x32xf32>
    %cst_50 = arith.constant dense<0.000000e+00> : vector<8x256xf32>
    %144 = tpu.matmul %143, %141, %cst_50 {dimension_numbers = #tpu.dot_dimension_numbers<[1], [0], [0], [1], [0, 0, 1, 1], [], []>} : vector<8x32xf32>, vector<32x256xf32>, vector<8x256xf32> -> vector<8x256xf32>
    %c0_51 = arith.constant 0 : index
    %c0_52 = arith.constant 0 : index
    %c0_53 = arith.constant 0 : index
    %145 = vector.load %arg6[%c0_51, %c0_52, %c0_53] : memref<1x8x1xf32, #tpu.memory_space<vmem>>, vector<1x8x1xf32>
    %146 = vector.shape_cast %145 : vector<1x8x1xf32> to vector<8x1xf32>
    %147 = vector.broadcast %146 : vector<8x1xf32> to vector<8x256xf32>
    %148 = arith.addf %144, %147 : vector<8x256xf32>
    %c0_54 = arith.constant 0 : index
    %c0_55 = arith.constant 0 : index
    %149 = vector.load %arg8[%c0_54, %c0_55] : memref<32x256xf32, #tpu.memory_space<vmem>>, vector<32x256xf32>
    tpu.vector_store %arg8[%c0_54, %c0_55], %103 {strides = array<i32>} : memref<32x256xf32, #tpu.memory_space<vmem>>, vector<32x256xf32>,
    %c0_56 = arith.constant 0 : index
    %c0_57 = arith.constant 0 : index
    %150 = vector.load %arg7[%c0_56, %c0_57] : memref<8x256xf32, #tpu.memory_space<vmem>>, vector<8x256xf32>
    tpu.vector_store %arg7[%c0_56, %c0_57], %148 {strides = array<i32>} : memref<8x256xf32, #tpu.memory_space<vmem>>, vector<8x256xf32>,
    return
  }
}

</mosaic_0001>

<llo_original>
// kernel: mscnn_forward.1
$region0: #{mscnn_forward.1}
  #allocation0 [shape = 'u32[]', space=smem, size = 0x4, offset = 0x4, fixed_abs, tag = 'smem constant byte address 0x4 - core index']
  #allocation1 [shape = 'u32[144,128]{1,0:T(1,128)}', space=vmem, size = 0x12000, scoped, tag = 'internal scratch']
  %s0 = inlined_call_operand.vmem [shape: f32[8,256], index: 0, kind: input, shape index: {}]
  %s1 = inlined_call_operand.vmem [shape: f32[1,32,56], index: 1, kind: input, shape index: {}]
  %s2 = inlined_call_operand.vmem [shape: f32[1,32,1], index: 2, kind: input, shape index: {}]
  %s3 = inlined_call_operand.vmem [shape: f32[1,16,1], index: 3, kind: input, shape index: {}]
  %s4 = inlined_call_operand.vmem [shape: f32[1,16,1], index: 4, kind: input, shape index: {}]
  %s5 = inlined_call_operand.vmem [shape: f32[1,8,32], index: 5, kind: input, shape index: {}]
  %s6 = inlined_call_operand.vmem [shape: f32[1,8,1], index: 6, kind: input, shape index: {}]
  %s7 = inlined_call_operand.vmem [shape: f32[8,256], index: 7, kind: output, shape index: {0}]
  %s8 = inlined_call_operand.vmem [shape: f32[32,256], index: 8, kind: output, shape index: {1}]
  %9 = xla_tuple %s7, %s8
  %s10 = sld [smem:[#allocation0]]
  $region46: #{mscnn_forward.1} parent=0
    _
  %s12 = ssub.s32 1, %s10
  %s13 = scalar_select 0, %s12, %s10
  // Predicated region
  $region2: #{mscnn_forward.1} parent=0 // pred_check
    _
  $region3: #{mscnn_forward.1} parent=0 // pred_check_branch
    %15 = sbr.rel (0) target = $region5
  $region4: #{mscnn_forward.1} parent=0 // pred_region
    _
  $region5: #{mscnn_forward.1} parent=0 // pred_fallthru
    _
  // Predicated region
  $region6: #{mscnn_forward.1} parent=0 // pred_check
    _
  $region7: #{mscnn_forward.1} parent=0 // pred_check_branch
    %17 = sbr.rel (0) target = $region9
  $region8: #{mscnn_forward.1} parent=0 // pred_region
    _
  $region9: #{mscnn_forward.1} parent=0 // pred_fallthru
    _
  // Predicated region
  $region10: #{mscnn_forward.1} parent=0 // pred_check
    _
  $region11: #{mscnn_forward.1} parent=0 // pred_check_branch
    %19 = sbr.rel (0) target = $region13
  $region12: #{mscnn_forward.1} parent=0 // pred_region
    _
  $region13: #{mscnn_forward.1} parent=0 // pred_fallthru
    _
  // Predicated region
  $region14: #{mscnn_forward.1} parent=0 // pred_check
    _
  $region15: #{mscnn_forward.1} parent=0 // pred_check_branch
    %21 = sbr.rel (0) target = $region17
  $region16: #{mscnn_forward.1} parent=0 // pred_region
    _
  $region17: #{mscnn_forward.1} parent=0 // pred_fallthru
    _
  // Predicated region
  $region18: #{mscnn_forward.1} parent=0 // pred_check
    _
  $region19: #{mscnn_forward.1} parent=0 // pred_check_branch
    %23 = sbr.rel (0) target = $region21
  $region20: #{mscnn_forward.1} parent=0 // pred_region
    _
  $region21: #{mscnn_forward.1} parent=0 // pred_fallthru
    _
  // Predicated region
  $region22: #{mscnn_forward.1} parent=0 // pred_check
    _
  $region23: #{mscnn_forward.1} parent=0 // pred_check_branch
    %25 = sbr.rel (0) target = $region25
  $region24: #{mscnn_forward.1} parent=0 // pred_region
    _
  $region25: #{mscnn_forward.1} parent=0 // pred_fallthru
    _
  // Predicated region
  $region26: #{mscnn_forward.1} parent=0 // pred_check
    _
  $region27: #{mscnn_forward.1} parent=0 // pred_check_branch
    %27 = sbr.rel (0) target = $region29
  $region28: #{mscnn_forward.1} parent=0 // pred_region
    _
  $region29: #{mscnn_forward.1} parent=0 // pred_fallthru
    _
  %v28 = vld [vmem:[%s0] sm:$0xff]
  %v29 = vld [vmem:[%s0 + $0x8] sm:$0xff]
  %v30 = vpack.c.bf16 %v28, %v28
  %v31 = vpack.c.bf16 %v29, %v29
  %v32 = vlaneseq
  %v33 = vshrl.u32 %v32, 7
  %v34 = vadd.s32 %v33, 8
  %v35 = vadd.s32 %v33, 16
  %v36 = vadd.s32 %v33, 24
  %v37 = vadd.s32 %v33, 32
  %v38 = vadd.s32 %v33, 40
  %v39 = vadd.s32 %v33, 48
  %v40 = vadd.s32 %v33, 56
  %v41 = vadd.s32 %v33, 64
  %v42 = vadd.s32 %v33, 72
  %v43 = vadd.s32 %v33, 80
  %v44 = vadd.s32 %v33, 88
  %v45 = vadd.s32 %v33, 96
  %v46 = vadd.s32 %v33, 104
  %v47 = vadd.s32 %v33, 112
  %v48 = vadd.s32 %v33, 120
  %v49 = vadd.s32 %v33, 128
  %v50 = vadd.s32 %v33, 136
  %v51 = vadd.s32 %v33, 144
  %v52 = vadd.s32 %v33, 152
  %v53 = vadd.s32 %v33, 160
  %v54 = vadd.s32 %v33, 168
  %v55 = vadd.s32 %v33, 176
  %v56 = vadd.s32 %v33, 184
  %v57 = vadd.s32 %v33, 192
  %v58 = vadd.s32 %v33, 200
  %v59 = vadd.s32 %v33, 208
  %v60 = vadd.s32 %v33, 216
  %v61 = vadd.s32 %v33, 224
  %v62 = vadd.s32 %v33, 232
  %v63 = vadd.s32 %v33, 240
  %v64 = vadd.s32 %v33, 248
  %v65 = vlaneseq
  %v66 = vand.u32 %v65, 127
  %v67 = vadd.s32 %v66, 64
  %v68 = vmul.u32 %v67, 2
  %v69 = vadd.s32 %v68, 4294967168
  %vm70 = vcmp.eq.s32.totalorder %v33, %v69
  %vm71 = vcmp.eq.s32.totalorder %v34, %v69
  %vm72 = vcmp.eq.s32.totalorder %v35, %v69
  %vm73 = vcmp.eq.s32.totalorder %v36, %v69
  %vm74 = vcmp.eq.s32.totalorder %v37, %v69
  %vm75 = vcmp.eq.s32.totalorder %v38, %v69
  %vm76 = vcmp.eq.s32.totalorder %v39, %v69
  %vm77 = vcmp.eq.s32.totalorder %v40, %v69
  %vm78 = vcmp.eq.s32.totalorder %v41, %v69
  %vm79 = vcmp.eq.s32.totalorder %v42, %v69
  %vm80 = vcmp.eq.s32.totalorder %v43, %v69
  %vm81 = vcmp.eq.s32.totalorder %v44, %v69
  %vm82 = vcmp.eq.s32.totalorder %v45, %v69
  %vm83 = vcmp.eq.s32.totalorder %v46, %v69
  %vm84 = vcmp.eq.s32.totalorder %v47, %v69
  %vm85 = vcmp.eq.s32.totalorder %v48, %v69
  %vm86 = vcmp.eq.s32.totalorder %v49, %v69
  %vm87 = vcmp.eq.s32.totalorder %v50, %v69
  %vm88 = vcmp.eq.s32.totalorder %v51, %v69
  %vm89 = vcmp.eq.s32.totalorder %v52, %v69
  %vm90 = vcmp.eq.s32.totalorder %v53, %v69
  %vm91 = vcmp.eq.s32.totalorder %v54, %v69
  %vm92 = vcmp.eq.s32.totalorder %v55, %v69
  %vm93 = vcmp.eq.s32.totalorder %v56, %v69
  %vm94 = vcmp.eq.s32.totalorder %v57, %v69
  %vm95 = vcmp.eq.s32.totalorder %v58, %v69
  %vm96 = vcmp.eq.s32.totalorder %v59, %v69
  %vm97 = vcmp.eq.s32.totalorder %v60, %v69
  %vm98 = vcmp.eq.s32.totalorder %v61, %v69
  %vm99 = vcmp.eq.s32.totalorder %v62, %v69
  %vm100 = vcmp.eq.s32.totalorder %v63, %v69
  %vm101 = vcmp.eq.s32.totalorder %v64, %v69
  %v102 = vsel %vm70, 1.0, 0.0
  %v103 = vsel %vm71, 1.0, 0.0
  %v104 = vsel %vm72, 1.0, 0.0
  %v105 = vsel %vm73, 1.0, 0.0
  %v106 = vsel %vm74, 1.0, 0.0
  %v107 = vsel %vm75, 1.0, 0.0
  %v108 = vsel %vm76, 1.0, 0.0
  %v109 = vsel %vm77, 1.0, 0.0
  %v110 = vsel %vm78, 1.0, 0.0
  %v111 = vsel %vm79, 1.0, 0.0
  %v112 = vsel %vm80, 1.0, 0.0
  %v113 = vsel %vm81, 1.0, 0.0
  %v114 = vsel %vm82, 1.0, 0.0
  %v115 = vsel %vm83, 1.0, 0.0
  %v116 = vsel %vm84, 1.0, 0.0
  %v117 = vsel %vm85, 1.0, 0.0
  %v118 = vsel %vm86, 1.0, 0.0
  %v119 = vsel %vm87, 1.0, 0.0
  %v120 = vsel %vm88, 1.0, 0.0
  %v121 = vsel %vm89, 1.0, 0.0
  %v122 = vsel %vm90, 1.0, 0.0
  %v123 = vsel %vm91, 1.0, 0.0
  %v124 = vsel %vm92, 1.0, 0.0
  %v125 = vsel %vm93, 1.0, 0.0
  %v126 = vsel %vm94, 1.0, 0.0
  %v127 = vsel %vm95, 1.0, 0.0
  %v128 = vsel %vm96, 1.0, 0.0
  %v129 = vsel %vm97, 1.0, 0.0
  %v130 = vsel %vm98, 1.0, 0.0
  %v131 = vsel %vm99, 1.0, 0.0
  %v132 = vsel %vm100, 1.0, 0.0
  %v133 = vsel %vm101, 1.0, 0.0
  %v134 = vadd.s32 %v68, 4294967169
  %vm135 = vcmp.eq.s32.totalorder %v33, %v134
  %vm136 = vcmp.eq.s32.totalorder %v34, %v134
  %vm137 = vcmp.eq.s32.totalorder %v35, %v134
  %vm138 = vcmp.eq.s32.totalorder %v36, %v134
  %vm139 = vcmp.eq.s32.totalorder %v37, %v134
  %vm140 = vcmp.eq.s32.totalorder %v38, %v134
  %vm141 = vcmp.eq.s32.totalorder %v39, %v134
  %vm142 = vcmp.eq.s32.totalorder %v40, %v134
  %vm143 = vcmp.eq.s32.totalorder %v41, %v134
  %vm144 = vcmp.eq.s32.totalorder %v42, %v134
  %vm145 = vcmp.eq.s32.totalorder %v43, %v134
  %vm146 = vcmp.eq.s32.totalorder %v44, %v134
  %vm147 = vcmp.eq.s32.totalorder %v45, %v134
  %vm148 = vcmp.eq.s32.totalorder %v46, %v134
  %vm149 = vcmp.eq.s32.totalorder %v47, %v134
  %vm150 = vcmp.eq.s32.totalorder %v48, %v134
  %vm151 = vcmp.eq.s32.totalorder %v49, %v134
  %vm152 = vcmp.eq.s32.totalorder %v50, %v134
  %vm153 = vcmp.eq.s32.totalorder %v51, %v134
  %vm154 = vcmp.eq.s32.totalorder %v52, %v134
  %vm155 = vcmp.eq.s32.totalorder %v53, %v134
  %vm156 = vcmp.eq.s32.totalorder %v54, %v134
  %vm157 = vcmp.eq.s32.totalorder %v55, %v134
  %vm158 = vcmp.eq.s32.totalorder %v56, %v134
  %vm159 = vcmp.eq.s32.totalorder %v57, %v134
  %vm160 = vcmp.eq.s32.totalorder %v58, %v134
  %vm161 = vcmp.eq.s32.totalorder %v59, %v134
  %vm162 = vcmp.eq.s32.totalorder %v60, %v134
  %vm163 = vcmp.eq.s32.totalorder %v61, %v134
  %vm164 = vcmp.eq.s32.totalorder %v62, %v134
  %vm165 = vcmp.eq.s32.totalorder %v63, %v134
  %vm166 = vcmp.eq.s32.totalorder %v64, %v134
  %v167 = vsel %vm135, 1.0, 0.0
  %v168 = vsel %vm136, 1.0, 0.0
  %v169 = vsel %vm137, 1.0, 0.0
  %v170 = vsel %vm138, 1.0, 0.0
  %v171 = vsel %vm139, 1.0, 0.0
  %v172 = vsel %vm140, 1.0, 0.0
  %v173 = vsel %vm141, 1.0, 0.0
  %v174 = vsel %vm142, 1.0, 0.0
  %v175 = vsel %vm143, 1.0, 0.0
  %v176 = vsel %vm144, 1.0, 0.0
  %v177 = vsel %vm145, 1.0, 0.0
  %v178 = vsel %vm146, 1.0, 0.0
  %v179 = vsel %vm147, 1.0, 0.0
  %v180 = vsel %vm148, 1.0, 0.0
  %v181 = vsel %vm149, 1.0, 0.0
  %v182 = vsel %vm150, 1.0, 0.0
  %v183 = vsel %vm151, 1.0, 0.0
  %v184 = vsel %vm152, 1.0, 0.0
  %v185 = vsel %vm153, 1.0, 0.0
  %v186 = vsel %vm154, 1.0, 0.0
  %v187 = vsel %vm155, 1.0, 0.0
  %v188 = vsel %vm156, 1.0, 0.0
  %v189 = vsel %vm157, 1.0, 0.0
  %v190 = vsel %vm158, 1.0, 0.0
  %v191 = vsel %vm159, 1.0, 0.0
  %v192 = vsel %vm160, 1.0, 0.0
  %v193 = vsel %vm161, 1.0, 0.0
  %v194 = vsel %vm162, 1.0, 0.0
  %v195 = vsel %vm163, 1.0, 0.0
  %v196 = vsel %vm164, 1.0, 0.0
  %v197 = vsel %vm165, 1.0, 0.0
  %v198 = vsel %vm166, 1.0, 0.0
  %v199 = vpack.c.bf16 %v103, %v102
  %v200 = vpack.c.bf16 %v168, %v167
  %v201 = vpack.c.bf16 %v105, %v104
  %v202 = vpack.c.bf16 %v170, %v169
  %v203 = vpack.c.bf16 %v107, %v106
  %v204 = vpack.c.bf16 %v172, %v171
  %v205 = vpack.c.bf16 %v109, %v108
  %v206 = vpack.c.bf16 %v174, %v173
  %v207 = vpack.c.bf16 %v111, %v110
  %v208 = vpack.c.bf16 %v176, %v175
  %v209 = vpack.c.bf16 %v113, %v112
  %v210 = vpack.c.bf16 %v178, %v177
  %v211 = vpack.c.bf16 %v115, %v114
  %v212 = vpack.c.bf16 %v180, %v179
  %v213 = vpack.c.bf16 %v117, %v116
  %v214 = vpack.c.bf16 %v182, %v181
  %v215 = vpack.c.bf16 %v119, %v118
  %v216 = vpack.c.bf16 %v184, %v183
  %v217 = vpack.c.bf16 %v121, %v120
  %v218 = vpack.c.bf16 %v186, %v185
  %v219 = vpack.c.bf16 %v123, %v122
  %v220 = vpack.c.bf16 %v188, %v187
  %v221 = vpack.c.bf16 %v125, %v124
  %v222 = vpack.c.bf16 %v190, %v189
  %v223 = vpack.c.bf16 %v127, %v126
  %v224 = vpack.c.bf16 %v192, %v191
  %v225 = vpack.c.bf16 %v129, %v128
  %v226 = vpack.c.bf16 %v194, %v193
  %v227 = vpack.c.bf16 %v131, %v130
  %v228 = vpack.c.bf16 %v196, %v195
  %v229 = vpack.c.bf16 %v133, %v132
  %v230 = vpack.c.bf16 %v198, %v197
  %231 = vmatprep.subr.bf16.mxu0 %v214
  %232 = vmatpush1.bf16.msra.mxu0 %v213
  %233 = vmatprep.subr.bf16.mxu0 %v212
  %234 = vmatpush1.bf16.msra.mxu0 %v211
  %235 = vmatprep.subr.bf16.mxu0 %v210
  %236 = vmatpush1.bf16.msra.mxu0 %v209
  %237 = vmatprep.subr.bf16.mxu0 %v208
  %238 = vmatpush1.bf16.msra.mxu0 %v207
  %239 = vmatprep.subr.bf16.mxu0 %v206
  %240 = vmatpush1.bf16.msra.mxu0 %v205
  %241 = vmatprep.subr.bf16.mxu0 %v204
  %242 = vmatpush1.bf16.msra.mxu0 %v203
  %243 = vmatprep.subr.bf16.mxu0 %v202
  %244 = vmatpush1.bf16.msra.mxu0 %v201
  %245 = vmatprep.subr.bf16.mxu0 %v200
  %246 = vmatpush1.bf16.msra.mxu0 %v199
  %247 = vmatprep.subr.bf16.mxu0 %v230
  %248 = vmatpush2.bf16.msra.mxu0 %v229
  %249 = vmatprep.subr.bf16.mxu0 %v228
  %250 = vmatpush2.bf16.msra.mxu0 %v227
  %251 = vmatprep.subr.bf16.mxu0 %v226
  %252 = vmatpush2.bf16.msra.mxu0 %v225
  %253 = vmatprep.subr.bf16.mxu0 %v224
  %254 = vmatpush2.bf16.msra.mxu0 %v223
  %255 = vmatprep.subr.bf16.mxu0 %v222
  %256 = vmatpush2.bf16.msra.mxu0 %v221
  %257 = vmatprep.subr.bf16.mxu0 %v220
  %258 = vmatpush2.bf16.msra.mxu0 %v219
  %259 = vmatprep.subr.bf16.mxu0 %v218
  %260 = vmatpush2.bf16.msra.mxu0 %v217
  %261 = vmatprep.subr.bf16.mxu0 %v216
  %262 = vmatpush2.bf16.msra.mxu0 %v215
  %263 = vmatprep.mubr.bf16.mxu0 %v31
  %264 = vmatmul.mubr.bf16.gmra.mxu0 %v30
  %v265 = vpop.f32.mrf.mxu0
  %v266 = vadd.f32 0.0, %v265
  %v267 = vpop.f32.mrf.mxu0
  %v268 = vadd.f32 0.0, %v267
  %v269 = vpop.f32.mrf.mxu0
  %v270 = vpop.f32.mrf.mxu0
  %271 = vdwg.mxu0
  %273 = vrot.lane.b32.xlu0 %v266, 64
  %v274 = vpop.permute.xlu0 %273
  %vm276 = vcmask 523264
  %v277 = vsel %vm276, 0.0, %v274
  %v278 = vsel %vm276, %v274, 0.0
  %280 = vrot.lane.b32.xlu0 %v268, 64
  %v281 = vpop.permute.xlu0 %280
  %v283 = vsel %vm276, 0.0, %v281
  %v284 = vsel %vm276, %v281, 0.0
  %v285 = vadd.s32 %v66, 96
  %v286 = vmul.u32 %v285, 4
  %v287 = vadd.s32 %v286, 4294966912
  %vm288 = vcmp.eq.s32.totalorder %v33, %v287
  %vm289 = vcmp.eq.s32.totalorder %v34, %v287
  %vm290 = vcmp.eq.s32.totalorder %v35, %v287
  %vm291 = vcmp.eq.s32.totalorder %v36, %v287
  %vm292 = vcmp.eq.s32.totalorder %v37, %v287
  %vm293 = vcmp.eq.s32.totalorder %v38, %v287
  %vm294 = vcmp.eq.s32.totalorder %v39, %v287
  %vm295 = vcmp.eq.s32.totalorder %v40, %v287
  %vm296 = vcmp.eq.s32.totalorder %v41, %v287
  %vm297 = vcmp.eq.s32.totalorder %v42, %v287
  %vm298 = vcmp.eq.s32.totalorder %v43, %v287
  %vm299 = vcmp.eq.s32.totalorder %v44, %v287
  %vm300 = vcmp.eq.s32.totalorder %v45, %v287
  %vm301 = vcmp.eq.s32.totalorder %v46, %v287
  %vm302 = vcmp.eq.s32.totalorder %v47, %v287
  %vm303 = vcmp.eq.s32.totalorder %v48, %v287
  %vm304 = vcmp.eq.s32.totalorder %v49, %v287
  %vm305 = vcmp.eq.s32.totalorder %v50, %v287
  %vm306 = vcmp.eq.s32.totalorder %v51, %v287
  %vm307 = vcmp.eq.s32.totalorder %v52, %v287
  %vm308 = vcmp.eq.s32.totalorder %v53, %v287
  %vm309 = vcmp.eq.s32.totalorder %v54, %v287
  %vm310 = vcmp.eq.s32.totalorder %v55, %v287
  %vm311 = vcmp.eq.s32.totalorder %v56, %v287
  %vm312 = vcmp.eq.s32.totalorder %v57, %v287
  %vm313 = vcmp.eq.s32.totalorder %v58, %v287
  %vm314 = vcmp.eq.s32.totalorder %v59, %v287
  %vm315 = vcmp.eq.s32.totalorder %v60, %v287
  %vm316 = vcmp.eq.s32.totalorder %v61, %v287
  %vm317 = vcmp.eq.s32.totalorder %v62, %v287
  %vm318 = vcmp.eq.s32.totalorder %v63, %v287
  %vm319 = vcmp.eq.s32.totalorder %v64, %v287
  %v320 = vsel %vm288, 1.0, 0.0
  %v321 = vsel %vm289, 1.0, 0.0
  %v322 = vsel %vm290, 1.0, 0.0
  %v323 = vsel %vm291, 1.0, 0.0
  %v324 = vsel %vm292, 1.0, 0.0
  %v325 = vsel %vm293, 1.0, 0.0
  %v326 = vsel %vm294, 1.0, 0.0
  %v327 = vsel %vm295, 1.0, 0.0
  %v328 = vsel %vm296, 1.0, 0.0
  %v329 = vsel %vm297, 1.0, 0.0
  %v330 = vsel %vm298, 1.0, 0.0
  %v331 = vsel %vm299, 1.0, 0.0
  %v332 = vsel %vm300, 1.0, 0.0
  %v333 = vsel %vm301, 1.0, 0.0
  %v334 = vsel %vm302, 1.0, 0.0
  %v335 = vsel %vm303, 1.0, 0.0
  %v336 = vsel %vm304, 1.0, 0.0
  %v337 = vsel %vm305, 1.0, 0.0
  %v338 = vsel %vm306, 1.0, 0.0
  %v339 = vsel %vm307, 1.0, 0.0
  %v340 = vsel %vm308, 1.0, 0.0
  %v341 = vsel %vm309, 1.0, 0.0
  %v342 = vsel %vm310, 1.0, 0.0
  %v343 = vsel %vm311, 1.0, 0.0
  %v344 = vsel %vm312, 1.0, 0.0
  %v345 = vsel %vm313, 1.0, 0.0
  %v346 = vsel %vm314, 1.0, 0.0
  %v347 = vsel %vm315, 1.0, 0.0
  %v348 = vsel %vm316, 1.0, 0.0
  %v349 = vsel %vm317, 1.0, 0.0
  %v350 = vsel %vm318, 1.0, 0.0
  %v351 = vsel %vm319, 1.0, 0.0
  %v352 = vadd.s32 %v286, 4294966913
  %vm353 = vcmp.eq.s32.totalorder %v33, %v352
  %vm354 = vcmp.eq.s32.totalorder %v34, %v352
  %vm355 = vcmp.eq.s32.totalorder %v35, %v352
  %vm356 = vcmp.eq.s32.totalorder %v36, %v352
  %vm357 = vcmp.eq.s32.totalorder %v37, %v352
  %vm358 = vcmp.eq.s32.totalorder %v38, %v352
  %vm359 = vcmp.eq.s32.totalorder %v39, %v352
  %vm360 = vcmp.eq.s32.totalorder %v40, %v352
  %vm361 = vcmp.eq.s32.totalorder %v41, %v352
  %vm362 = vcmp.eq.s32.totalorder %v42, %v352
  %vm363 = vcmp.eq.s32.totalorder %v43, %v352
  %vm364 = vcmp.eq.s32.totalorder %v44, %v352
  %vm365 = vcmp.eq.s32.totalorder %v45, %v352
  %vm366 = vcmp.eq.s32.totalorder %v46, %v352
  %vm367 = vcmp.eq.s32.totalorder %v47, %v352
  %vm368 = vcmp.eq.s32.totalorder %v48, %v352
  %vm369 = vcmp.eq.s32.totalorder %v49, %v352
  %vm370 = vcmp.eq.s32.totalorder %v50, %v352
  %vm371 = vcmp.eq.s32.totalorder %v51, %v352
  %vm372 = vcmp.eq.s32.totalorder %v52, %v352
  %vm373 = vcmp.eq.s32.totalorder %v53, %v352
  %vm374 = vcmp.eq.s32.totalorder %v54, %v352
  %vm375 = vcmp.eq.s32.totalorder %v55, %v352
  %vm376 = vcmp.eq.s32.totalorder %v56, %v352
  %vm377 = vcmp.eq.s32.totalorder %v57, %v352
  %vm378 = vcmp.eq.s32.totalorder %v58, %v352
  %vm379 = vcmp.eq.s32.totalorder %v59, %v352
  %vm380 = vcmp.eq.s32.totalorder %v60, %v352
  %vm381 = vcmp.eq.s32.totalorder %v61, %v352
  %vm382 = vcmp.eq.s32.totalorder %v62, %v352
  %vm383 = vcmp.eq.s32.totalorder %v63, %v352
  %vm384 = vcmp.eq.s32.totalorder %v64, %v352
  %v385 = vsel %vm353, 1.0, 0.0
  %v386 = vsel %vm354, 1.0, 0.0
  %v387 = vsel %vm355, 1.0, 0.0
  %v388 = vsel %vm356, 1.0, 0.0
  %v389 = vsel %vm357, 1.0, 0.0
  %v390 = vsel %vm358, 1.0, 0.0
  %v391 = vsel %vm359, 1.0, 0.0
  %v392 = vsel %vm360, 1.0, 0.0
  %v393 = vsel %vm361, 1.0, 0.0
  %v394 = vsel %vm362, 1.0, 0.0
  %v395 = vsel %vm363, 1.0, 0.0
  %v396 = vsel %vm364, 1.0, 0.0
  %v397 = vsel %vm365, 1.0, 0.0
  %v398 = vsel %vm366, 1.0, 0.0
  %v399 = vsel %vm367, 1.0, 0.0
  %v400 = vsel %vm368, 1.0, 0.0
  %v401 = vsel %vm369, 1.0, 0.0
  %v402 = vsel %vm370, 1.0, 0.0
  %v403 = vsel %vm371, 1.0, 0.0
  %v404 = vsel %vm372, 1.0, 0.0
  %v405 = vsel %vm373, 1.0, 0.0
  %v406 = vsel %vm374, 1.0, 0.0
  %v407 = vsel %vm375, 1.0, 0.0
  %v408 = vsel %vm376, 1.0, 0.0
  %v409 = vsel %vm377, 1.0, 0.0
  %v410 = vsel %vm378, 1.0, 0.0
  %v411 = vsel %vm379, 1.0, 0.0
  %v412 = vsel %vm380, 1.0, 0.0
  %v413 = vsel %vm381, 1.0, 0.0
  %v414 = vsel %vm382, 1.0, 0.0
  %v415 = vsel %vm383, 1.0, 0.0
  %v416 = vsel %vm384, 1.0, 0.0
  %v417 = vadd.s32 %v286, 4294966914
  %vm418 = vcmp.eq.s32.totalorder %v33, %v417
  %vm419 = vcmp.eq.s32.totalorder %v34, %v417
  %vm420 = vcmp.eq.s32.totalorder %v35, %v417
  %vm421 = vcmp.eq.s32.totalorder %v36, %v417
  %vm422 = vcmp.eq.s32.totalorder %v37, %v417
  %vm423 = vcmp.eq.s32.totalorder %v38, %v417
  %vm424 = vcmp.eq.s32.totalorder %v39, %v417
  %vm425 = vcmp.eq.s32.totalorder %v40, %v417
  %vm426 = vcmp.eq.s32.totalorder %v41, %v417
  %vm427 = vcmp.eq.s32.totalorder %v42, %v417
  %vm428 = vcmp.eq.s32.totalorder %v43, %v417
  %vm429 = vcmp.eq.s32.totalorder %v44, %v417
  %vm430 = vcmp.eq.s32.totalorder %v45, %v417
  %vm431 = vcmp.eq.s32.totalorder %v46, %v417
  %vm432 = vcmp.eq.s32.totalorder %v47, %v417
  %vm433 = vcmp.eq.s32.totalorder %v48, %v417
  %vm434 = vcmp.eq.s32.totalorder %v49, %v417
  %vm435 = vcmp.eq.s32.totalorder %v50, %v417
  %vm436 = vcmp.eq.s32.totalorder %v51, %v417
  %vm437 = vcmp.eq.s32.totalorder %v52, %v417
  %vm438 = vcmp.eq.s32.totalorder %v53, %v417
  %vm439 = vcmp.eq.s32.totalorder %v54, %v417
  %vm440 = vcmp.eq.s32.totalorder %v55, %v417
  %vm441 = vcmp.eq.s32.totalorder %v56, %v417
  %vm442 = vcmp.eq.s32.totalorder %v57, %v417
  %vm443 = vcmp.eq.s32.totalorder %v58, %v417
  %vm444 = vcmp.eq.s32.totalorder %v59, %v417
  %vm445 = vcmp.eq.s32.totalorder %v60, %v417
  %vm446 = vcmp.eq.s32.totalorder %v61, %v417
  %vm447 = vcmp.eq.s32.totalorder %v62, %v417
  %vm448 = vcmp.eq.s32.totalorder %v63, %v417
  %vm449 = vcmp.eq.s32.totalorder %v64, %v417
  %v450 = vsel %vm418, 1.0, 0.0
  %v451 = vsel %vm419, 1.0, 0.0
  %v452 = vsel %vm420, 1.0, 0.0
  %v453 = vsel %vm421, 1.0, 0.0
  %v454 = vsel %vm422, 1.0, 0.0
  %v455 = vsel %vm423, 1.0, 0.0
  %v456 = vsel %vm424, 1.0, 0.0
  %v457 = vsel %vm425, 1.0, 0.0
  %v458 = vsel %vm426, 1.0, 0.0
  %v459 = vsel %vm427, 1.0, 0.0
  %v460 = vsel %vm428, 1.0, 0.0
  %v461 = vsel %vm429, 1.0, 0.0
  %v462 = vsel %vm430, 1.0, 0.0
  %v463 = vsel %vm431, 1.0, 0.0
  %v464 = vsel %vm432, 1.0, 0.0
  %v465 = vsel %vm433, 1.0, 0.0
  %v466 = vsel %vm434, 1.0, 0.0
  %v467 = vsel %vm435, 1.0, 0.0
  %v468 = vsel %vm436, 1.0, 0.0
  %v469 = vsel %vm437, 1.0, 0.0
  %v470 = vsel %vm438, 1.0, 0.0
  %v471 = vsel %vm439, 1.0, 0.0
  %v472 = vsel %vm440, 1.0, 0.0
  %v473 = vsel %vm441, 1.0, 0.0
  %v474 = vsel %vm442, 1.0, 0.0
  %v475 = vsel %vm443, 1.0, 0.0
  %v476 = vsel %vm444, 1.0, 0.0
  %v477 = vsel %vm445, 1.0, 0.0
  %v478 = vsel %vm446, 1.0, 0.0
  %v479 = vsel %vm447, 1.0, 0.0
  %v480 = vsel %vm448, 1.0, 0.0
  %v481 = vsel %vm449, 1.0, 0.0
  %v482 = vadd.s32 %v286, 4294966915
  %vm483 = vcmp.eq.s32.totalorder %v33, %v482
  %vm484 = vcmp.eq.s32.totalorder %v34, %v482
  %vm485 = vcmp.eq.s32.totalorder %v35, %v482
  %vm486 = vcmp.eq.s32.totalorder %v36, %v482
  %vm487 = vcmp.eq.s32.totalorder %v37, %v482
  %vm488 = vcmp.eq.s32.totalorder %v38, %v482
  %vm489 = vcmp.eq.s32.totalorder %v39, %v482
  %vm490 = vcmp.eq.s32.totalorder %v40, %v482
  %vm491 = vcmp.eq.s32.totalorder %v41, %v482
  %vm492 = vcmp.eq.s32.totalorder %v42, %v482
  %vm493 = vcmp.eq.s32.totalorder %v43, %v482
  %vm494 = vcmp.eq.s32.totalorder %v44, %v482
  %vm495 = vcmp.eq.s32.totalorder %v45, %v482
  %vm496 = vcmp.eq.s32.totalorder %v46, %v482
  %vm497 = vcmp.eq.s32.totalorder %v47, %v482
  %vm498 = vcmp.eq.s32.totalorder %v48, %v482
  %vm499 = vcmp.eq.s32.totalorder %v49, %v482
  %vm500 = vcmp.eq.s32.totalorder %v50, %v482
  %vm501 = vcmp.eq.s32.totalorder %v51, %v482
  %vm502 = vcmp.eq.s32.totalorder %v52, %v482
  %vm503 = vcmp.eq.s32.totalorder %v53, %v482
  %vm504 = vcmp.eq.s32.totalorder %v54, %v482
  %vm505 = vcmp.eq.s32.totalorder %v55, %v482
  %vm506 = vcmp.eq.s32.totalorder %v56, %v482
  %vm507 = vcmp.eq.s32.totalorder %v57, %v482
  %vm508 = vcmp.eq.s32.totalorder %v58, %v482
  %vm509 = vcmp.eq.s32.totalorder %v59, %v482
  %vm510 = vcmp.eq.s32.totalorder %v60, %v482
  %vm511 = vcmp.eq.s32.totalorder %v61, %v482
  %vm512 = vcmp.eq.s32.totalorder %v62, %v482
  %vm513 = vcmp.eq.s32.totalorder %v63, %v482
  %vm514 = vcmp.eq.s32.totalorder %v64, %v482
  %v515 = vsel %vm483, 1.0, 0.0
  %v516 = vsel %vm484, 1.0, 0.0
  %v517 = vsel %vm485, 1.0, 0.0
  %v518 = vsel %vm486, 1.0, 0.0
  %v519 = vsel %vm487, 1.0, 0.0
  %v520 = vsel %vm488, 1.0, 0.0
  %v521 = vsel %vm489, 1.0, 0.0
  %v522 = vsel %vm490, 1.0, 0.0
  %v523 = vsel %vm491, 1.0, 0.0
  %v524 = vsel %vm492, 1.0, 0.0
  %v525 = vsel %vm493, 1.0, 0.0
  %v526 = vsel %vm494, 1.0, 0.0
  %v527 = vsel %vm495, 1.0, 0.0
  %v528 = vsel %vm496, 1.0, 0.0
  %v529 = vsel %vm497, 1.0, 0.0
  %v530 = vsel %vm498, 1.0, 0.0
  %v531 = vsel %vm499, 1.0, 0.0
  %v532 = vsel %vm500, 1.0, 0.0
  %v533 = vsel %vm501, 1.0, 0.0
  %v534 = vsel %vm502, 1.0, 0.0
  %v535 = vsel %vm503, 1.0, 0.0
  %v536 = vsel %vm504, 1.0, 0.0
  %v537 = vsel %vm505, 1.0, 0.0
  %v538 = vsel %vm506, 1.0, 0.0
  %v539 = vsel %vm507, 1.0, 0.0
  %v540 = vsel %vm508, 1.0, 0.0
  %v541 = vsel %vm509, 1.0, 0.0
  %v542 = vsel %vm510, 1.0, 0.0
  %v543 = vsel %vm511, 1.0, 0.0
  %v544 = vsel %vm512, 1.0, 0.0
  %v545 = vsel %vm513, 1.0, 0.0
  %v546 = vsel %vm514, 1.0, 0.0
  %579 = vrot.lane.b32.xlu0 %v385, 64
  %v580 = vpop.permute.xlu0 %579
  %581 = vrot.lane.b32.xlu0 %v386, 64
  %v582 = vpop.permute.xlu0 %581
  %583 = vrot.lane.b32.xlu0 %v387, 64
  %v584 = vpop.permute.xlu0 %583
  %585 = vrot.lane.b32.xlu0 %v388, 64
  %v586 = vpop.permute.xlu0 %585
  %587 = vrot.lane.b32.xlu0 %v389, 64
  %v588 = vpop.permute.xlu0 %587
  %589 = vrot.lane.b32.xlu0 %v390, 64
  %v590 = vpop.permute.xlu0 %589
  %591 = vrot.lane.b32.xlu0 %v391, 64
  %v592 = vpop.permute.xlu0 %591
  %593 = vrot.lane.b32.xlu0 %v392, 64
  %v594 = vpop.permute.xlu0 %593
  %595 = vrot.lane.b32.xlu0 %v393, 64
  %v596 = vpop.permute.xlu0 %595
  %597 = vrot.lane.b32.xlu0 %v394, 64
  %v598 = vpop.permute.xlu0 %597
  %599 = vrot.lane.b32.xlu0 %v395, 64
  %v600 = vpop.permute.xlu0 %599
  %601 = vrot.lane.b32.xlu0 %v396, 64
  %v602 = vpop.permute.xlu0 %601
  %603 = vrot.lane.b32.xlu0 %v397, 64
  %v604 = vpop.permute.xlu0 %603
  %605 = vrot.lane.b32.xlu0 %v398, 64
  %v606 = vpop.permute.xlu0 %605
  %607 = vrot.lane.b32.xlu0 %v399, 64
  %v608 = vpop.permute.xlu0 %607
  %609 = vrot.lane.b32.xlu0 %v400, 64
  %v610 = vpop.permute.xlu0 %609
  %611 = vrot.lane.b32.xlu0 %v401, 64
  %v612 = vpop.permute.xlu0 %611
  %613 = vrot.lane.b32.xlu0 %v402, 64
  %v614 = vpop.permute.xlu0 %613
  %615 = vrot.lane.b32.xlu0 %v403, 64
  %v616 = vpop.permute.xlu0 %615
  %617 = vrot.lane.b32.xlu0 %v404, 64
  %v618 = vpop.permute.xlu0 %617
  %619 = vrot.lane.b32.xlu0 %v405, 64
  %v620 = vpop.permute.xlu0 %619
  %621 = vrot.lane.b32.xlu0 %v406, 64
  %v622 = vpop.permute.xlu0 %621
  %623 = vrot.lane.b32.xlu0 %v407, 64
  %v624 = vpop.permute.xlu0 %623
  %625 = vrot.lane.b32.xlu0 %v408, 64
  %v626 = vpop.permute.xlu0 %625
  %627 = vrot.lane.b32.xlu0 %v409, 64
  %v628 = vpop.permute.xlu0 %627
  %629 = vrot.lane.b32.xlu0 %v410, 64
  %v630 = vpop.permute.xlu0 %629
  %631 = vrot.lane.b32.xlu0 %v411, 64
  %v632 = vpop.permute.xlu0 %631
  %633 = vrot.lane.b32.xlu0 %v412, 64
  %v634 = vpop.permute.xlu0 %633
  %635 = vrot.lane.b32.xlu0 %v413, 64
  %v636 = vpop.permute.xlu0 %635
  %637 = vrot.lane.b32.xlu0 %v414, 64
  %v638 = vpop.permute.xlu0 %637
  %639 = vrot.lane.b32.xlu0 %v415, 64
  %v640 = vpop.permute.xlu0 %639
  %641 = vrot.lane.b32.xlu0 %v416, 64
  %v642 = vpop.permute.xlu0 %641
  %707 = vrot.lane.b32.xlu0 %v515, 64
  %v708 = vpop.permute.xlu0 %707
  %709 = vrot.lane.b32.xlu0 %v516, 64
  %v710 = vpop.permute.xlu0 %709
  %711 = vrot.lane.b32.xlu0 %v517, 64
  %v712 = vpop.permute.xlu0 %711
  %713 = vrot.lane.b32.xlu0 %v518, 64
  %v714 = vpop.permute.xlu0 %713
  %715 = vrot.lane.b32.xlu0 %v519, 64
  %v716 = vpop.permute.xlu0 %715
  %717 = vrot.lane.b32.xlu0 %v520, 64
  %v718 = vpop.permute.xlu0 %717
  %719 = vrot.lane.b32.xlu0 %v521, 64
  %v720 = vpop.permute.xlu0 %719
  %721 = vrot.lane.b32.xlu0 %v522, 64
  %v722 = vpop.permute.xlu0 %721
  %723 = vrot.lane.b32.xlu0 %v523, 64
  %v724 = vpop.permute.xlu0 %723
  %725 = vrot.lane.b32.xlu0 %v524, 64
  %v726 = vpop.permute.xlu0 %725
  %727 = vrot.lane.b32.xlu0 %v525, 64
  %v728 = vpop.permute.xlu0 %727
  %729 = vrot.lane.b32.xlu0 %v526, 64
  %v730 = vpop.permute.xlu0 %729
  %731 = vrot.lane.b32.xlu0 %v527, 64
  %v732 = vpop.permute.xlu0 %731
  %733 = vrot.lane.b32.xlu0 %v528, 64
  %v734 = vpop.permute.xlu0 %733
  %735 = vrot.lane.b32.xlu0 %v529, 64
  %v736 = vpop.permute.xlu0 %735
  %737 = vrot.lane.b32.xlu0 %v530, 64
  %v738 = vpop.permute.xlu0 %737
  %739 = vrot.lane.b32.xlu0 %v531, 64
  %v740 = vpop.permute.xlu0 %739
  %741 = vrot.lane.b32.xlu0 %v532, 64
  %v742 = vpop.permute.xlu0 %741
  %743 = vrot.lane.b32.xlu0 %v533, 64
  %v744 = vpop.permute.xlu0 %743
  %745 = vrot.lane.b32.xlu0 %v534, 64
  %v746 = vpop.permute.xlu0 %745
  %747 = vrot.lane.b32.xlu0 %v535, 64
  %v748 = vpop.permute.xlu0 %747
  %749 = vrot.lane.b32.xlu0 %v536, 64
  %v750 = vpop.permute.xlu0 %749
  %751 = vrot.lane.b32.xlu0 %v537, 64
  %v752 = vpop.permute.xlu0 %751
  %753 = vrot.lane.b32.xlu0 %v538, 64
  %v754 = vpop.permute.xlu0 %753
  %755 = vrot.lane.b32.xlu0 %v539, 64
  %v756 = vpop.permute.xlu0 %755
  %757 = vrot.lane.b32.xlu0 %v540, 64
  %v758 = vpop.permute.xlu0 %757
  %759 = vrot.lane.b32.xlu0 %v541, 64
  %v760 = vpop.permute.xlu0 %759
  %761 = vrot.lane.b32.xlu0 %v542, 64
  %v762 = vpop.permute.xlu0 %761
  %763 = vrot.lane.b32.xlu0 %v543, 64
  %v764 = vpop.permute.xlu0 %763
  %765 = vrot.lane.b32.xlu0 %v544, 64
  %v766 = vpop.permute.xlu0 %765
  %767 = vrot.lane.b32.xlu0 %v545, 64
  %v768 = vpop.permute.xlu0 %767
  %769 = vrot.lane.b32.xlu0 %v546, 64
  %v770 = vpop.permute.xlu0 %769
  %v803 = vsel %vm276, %v320, %v580
  %v804 = vsel %vm276, %v321, %v582
  %v805 = vsel %vm276, %v322, %v584
  %v806 = vsel %vm276, %v323, %v586
  %v807 = vsel %vm276, %v324, %v588
  %v808 = vsel %vm276, %v325, %v590
  %v809 = vsel %vm276, %v326, %v592
  %v810 = vsel %vm276, %v327, %v594
  %v811 = vsel %vm276, %v328, %v596
  %v812 = vsel %vm276, %v329, %v598
  %v813 = vsel %vm276, %v330, %v600
  %v814 = vsel %vm276, %v331, %v602
  %v815 = vsel %vm276, %v332, %v604
  %v816 = vsel %vm276, %v333, %v606
  %v817 = vsel %vm276, %v334, %v608
  %v818 = vsel %vm276, %v335, %v610
  %v819 = vsel %vm276, %v336, %v612
  %v820 = vsel %vm276, %v337, %v614
  %v821 = vsel %vm276, %v338, %v616
  %v822 = vsel %vm276, %v339, %v618
  %v823 = vsel %vm276, %v340, %v620
  %v824 = vsel %vm276, %v341, %v622
  %v825 = vsel %vm276, %v342, %v624
  %v826 = vsel %vm276, %v343, %v626
  %v827 = vsel %vm276, %v344, %v628
  %v828 = vsel %vm276, %v345, %v630
  %v829 = vsel %vm276, %v346, %v632
  %v830 = vsel %vm276, %v347, %v634
  %v831 = vsel %vm276, %v348, %v636
  %v832 = vsel %vm276, %v349, %v638
  %v833 = vsel %vm276, %v350, %v640
  %v834 = vsel %vm276, %v351, %v642
  %v835 = vsel %vm276, %v450, %v708
  %v836 = vsel %vm276, %v451, %v710
  %v837 = vsel %vm276, %v452, %v712
  %v838 = vsel %vm276, %v453, %v714
  %v839 = vsel %vm276, %v454, %v716
  %v840 = vsel %vm276, %v455, %v718
  %v841 = vsel %vm276, %v456, %v720
  %v842 = vsel %vm276, %v457, %v722
  %v843 = vsel %vm276, %v458, %v724
  %v844 = vsel %vm276, %v459, %v726
  %v845 = vsel %vm276, %v460, %v728
  %v846 = vsel %vm276, %v461, %v730
  %v847 = vsel %vm276, %v462, %v732
  %v848 = vsel %vm276, %v463, %v734
  %v849 = vsel %vm276, %v464, %v736
  %v850 = vsel %vm276, %v465, %v738
  %v851 = vsel %vm276, %v466, %v740
  %v852 = vsel %vm276, %v467, %v742
  %v853 = vsel %vm276, %v468, %v744
  %v854 = vsel %vm276, %v469, %v746
  %v855 = vsel %vm276, %v470, %v748
  %v856 = vsel %vm276, %v471, %v750
  %v857 = vsel %vm276, %v472, %v752
  %v858 = vsel %vm276, %v473, %v754
  %v859 = vsel %vm276, %v474, %v756
  %v860 = vsel %vm276, %v475, %v758
  %v861 = vsel %vm276, %v476, %v760
  %v862 = vsel %vm276, %v477, %v762
  %v863 = vsel %vm276, %v478, %v764
  %v864 = vsel %vm276, %v479, %v766
  %v865 = vsel %vm276, %v480, %v768
  %v866 = vsel %vm276, %v481, %v770
  %v867 = vpack.c.bf16 %v804, %v803
  %v868 = vpack.c.bf16 %v836, %v835
  %v869 = vpack.c.bf16 %v806, %v805
  %v870 = vpack.c.bf16 %v838, %v837
  %v871 = vpack.c.bf16 %v808, %v807
  %v872 = vpack.c.bf16 %v840, %v839
  %v873 = vpack.c.bf16 %v810, %v809
  %v874 = vpack.c.bf16 %v842, %v841
  %v875 = vpack.c.bf16 %v812, %v811
  %v876 = vpack.c.bf16 %v844, %v843
  %v877 = vpack.c.bf16 %v814, %v813
  %v878 = vpack.c.bf16 %v846, %v845
  %v879 = vpack.c.bf16 %v816, %v815
  %v880 = vpack.c.bf16 %v848, %v847
  %v881 = vpack.c.bf16 %v818, %v817
  %v882 = vpack.c.bf16 %v850, %v849
  %v883 = vpack.c.bf16 %v820, %v819
  %v884 = vpack.c.bf16 %v852, %v851
  %v885 = vpack.c.bf16 %v822, %v821
  %v886 = vpack.c.bf16 %v854, %v853
  %v887 = vpack.c.bf16 %v824, %v823
  %v888 = vpack.c.bf16 %v856, %v855
  %v889 = vpack.c.bf16 %v826, %v825
  %v890 = vpack.c.bf16 %v858, %v857
  %v891 = vpack.c.bf16 %v828, %v827
  %v892 = vpack.c.bf16 %v860, %v859
  %v893 = vpack.c.bf16 %v830, %v829
  %v894 = vpack.c.bf16 %v862, %v861
  %v895 = vpack.c.bf16 %v832, %v831
  %v896 = vpack.c.bf16 %v864, %v863
  %v897 = vpack.c.bf16 %v834, %v833
  %v898 = vpack.c.bf16 %v866, %v865
  %899 = vmatprep.subr.bf16.mxu0 %v882
  %900 = vmatpush1.bf16.msra.mxu0 %v881
  %901 = vmatprep.subr.bf16.mxu0 %v880
  %902 = vmatpush1.bf16.msra.mxu0 %v879
  %903 = vmatprep.subr.bf16.mxu0 %v878
  %904 = vmatpush1.bf16.msra.mxu0 %v877
  %905 = vmatprep.subr.bf16.mxu0 %v876
  %906 = vmatpush1.bf16.msra.mxu0 %v875
  %907 = vmatprep.subr.bf16.mxu0 %v874
  %908 = vmatpush1.bf16.msra.mxu0 %v873
  %909 = vmatprep.subr.bf16.mxu0 %v872
  %910 = vmatpush1.bf16.msra.mxu0 %v871
  %911 = vmatprep.subr.bf16.mxu0 %v870
  %912 = vmatpush1.bf16.msra.mxu0 %v869
  %913 = vmatprep.subr.bf16.mxu0 %v868
  %914 = vmatpush1.bf16.msra.mxu0 %v867
  %915 = vmatprep.subr.bf16.mxu0 %v898
  %916 = vmatpush2.bf16.msra.mxu0 %v897
  %917 = vmatprep.subr.bf16.mxu0 %v896
  %918 = vmatpush2.bf16.msra.mxu0 %v895
  %919 = vmatprep.subr.bf16.mxu0 %v894
  %920 = vmatpush2.bf16.msra.mxu0 %v893
  %921 = vmatprep.subr.bf16.mxu0 %v892
  %922 = vmatpush2.bf16.msra.mxu0 %v891
  %923 = vmatprep.subr.bf16.mxu0 %v890
  %924 = vmatpush2.bf16.msra.mxu0 %v889
  %925 = vmatprep.subr.bf16.mxu0 %v888
  %926 = vmatpush2.bf16.msra.mxu0 %v887
  %927 = vmatprep.subr.bf16.mxu0 %v886
  %928 = vmatpush2.bf16.msra.mxu0 %v885
  %929 = vmatprep.subr.bf16.mxu0 %v884
  %930 = vmatpush2.bf16.msra.mxu0 %v883
  %931 = vmatprep.mubr.bf16.mxu0 %v31
  %932 = vmatmul.mubr.bf16.gmra.mxu0 %v30
  %v933 = vpop.f32.mrf.mxu0
  %v934 = vadd.f32 0.0, %v933
  %v935 = vpop.f32.mrf.mxu0
  %v936 = vadd.f32 0.0, %v935
  %v937 = vpop.f32.mrf.mxu0
  %v938 = vpop.f32.mrf.mxu0
  %939 = vdwg.mxu0
  %941 = vrot.lane.b32.xlu0 %v934, 96
  %v942 = vpop.permute.xlu0 %941
  %vm944 = vcmask 785408
  %v945 = vsel %vm944, 0.0, %v942
  %vm946 = vcmask 261120
  %v947 = vsel %vm946, %v942, 0.0
  %948 = vrot.lane.b32.xlu0 %v934, 32
  %v949 = vpop.permute.xlu0 %948
  %v951 = vsel %vm944, 0.0, %v949
  %v952 = vsel %vm946, %v949, 0.0
  %954 = vrot.lane.b32.xlu0 %v936, 96
  %v955 = vpop.permute.xlu0 %954
  %v957 = vsel %vm944, 0.0, %v955
  %v958 = vsel %vm946, %v955, 0.0
  %959 = vrot.lane.b32.xlu0 %v936, 32
  %v960 = vpop.permute.xlu0 %959
  %v962 = vsel %vm944, 0.0, %v960
  %v963 = vsel %vm946, %v960, 0.0
  %v964 = vld [vmem:[%s1] sm:$0xff]
  %v965 = vld [vmem:[%s1 + $0x8] sm:$0xff]
  %v966 = vld [vmem:[%s1 + $0x10] sm:$0xff]
  %v967 = vld [vmem:[%s1 + $0x18] sm:$0xff]
  %v968 = vld [vmem:[%s2] sm:$0xff]
  %v969 = vld [vmem:[%s2 + $0x8] sm:$0xff]
  %v970 = vld [vmem:[%s2 + $0x10] sm:$0xff]
  %v971 = vld [vmem:[%s2 + $0x18] sm:$0xff]
  %973 = vset.pattern.permute.xlu0 0
  %974 = vperm.xlu0 %973, %v968
  %v975 = vpop.permute.xlu0 %974
  %978 = vset.pattern.permute.xlu0 0
  %979 = vperm.xlu0 %978, %v969
  %v980 = vpop.permute.xlu0 %979
  %983 = vset.pattern.permute.xlu0 0
  %984 = vperm.xlu0 %983, %v970
  %v985 = vpop.permute.xlu0 %984
  %988 = vset.pattern.permute.xlu0 0
  %989 = vperm.xlu0 %988, %v971
  %v990 = vpop.permute.xlu0 %989
  %vm992 = vcmask 457728
  %v994 = vsel %vm992, %v964, 0
  %v997 = vsel %vm992, %v965, 0
  %v1000 = vsel %vm992, %v966, 0
  %v1003 = vsel %vm992, %v967, 0
  %1005 = vmatprep.subr.mxu0 0.0
  %1006 = vmatpush1.msra.mxu0 0.0
  %1007 = vmatprep.subr.mxu0 0.0
  %1008 = vmatpush1.msra.mxu0 0.0
  %1009 = vmatprep.subr.mxu0 0.0
  %1010 = vmatpush1.msra.mxu0 0.0
  %1011 = vmatprep.subr.mxu0 0.0
  %1012 = vmatpush1.msra.mxu0 0.0
  %1013 = vmatprep.subr.mxu0 0.0
  %1014 = vmatpush1.msra.mxu0 0.0
  %1015 = vmatprep.subr.mxu0 0.0
  %1016 = vmatpush1.msra.mxu0 0.0
  %1017 = vmatprep.subr.mxu0 0.0
  %1018 = vmatpush1.msra.mxu0 0.0
  %1019 = vmatprep.subr.mxu0 0.0
  %1020 = vmatpush1.msra.mxu0 0.0
  %1021 = vmatprep.subr.mxu0 0.0
  %1022 = vmatpush1.msra.mxu0 0.0
  %1023 = vmatprep.subr.mxu0 %v963
  %1024 = vmatpush1.msra.mxu0 %v962
  %1025 = vmatprep.subr.mxu0 %v958
  %1026 = vmatpush1.msra.mxu0 %v957
  %1027 = vmatprep.subr.mxu0 %v952
  %1028 = vmatpush1.msra.mxu0 %v951
  %1029 = vmatprep.subr.mxu0 %v947
  %1030 = vmatpush1.msra.mxu0 %v945
  %1031 = vmatprep.subr.mxu0 %v284
  %1032 = vmatpush1.msra.mxu0 %v283
  %1033 = vmatprep.subr.mxu0 %v278
  %1034 = vmatpush1.msra.mxu0 %v277
  %1035 = vmatprep.subr.mxu0 %v29
  %1036 = vmatpush1.msra.mxu0 %v28
  %1037 = vmatprep.subr.mxu0 0.0
  %1038 = vmatpush2.msra.mxu0 0.0
  %1039 = vmatprep.subr.mxu0 0.0
  %1040 = vmatpush2.msra.mxu0 0.0
  %1041 = vmatprep.subr.mxu0 0.0
  %1042 = vmatpush2.msra.mxu0 0.0
  %1043 = vmatprep.subr.mxu0 0.0
  %1044 = vmatpush2.msra.mxu0 0.0
  %1045 = vmatprep.subr.mxu0 0.0
  %1046 = vmatpush2.msra.mxu0 0.0
  %1047 = vmatprep.subr.mxu0 0.0
  %1048 = vmatpush2.msra.mxu0 0.0
  %1049 = vmatprep.subr.mxu0 0.0
  %1050 = vmatpush2.msra.mxu0 0.0
  %1051 = vmatprep.subr.mxu0 0.0
  %1052 = vmatpush2.msra.mxu0 0.0
  %1053 = vmatprep.subr.mxu0 0.0
  %1054 = vmatpush2.msra.mxu0 0.0
  %1055 = vmatprep.subr.mxu0 0.0
  %1056 = vmatpush2.msra.mxu0 0.0
  %1057 = vmatprep.subr.mxu0 0.0
  %1058 = vmatpush2.msra.mxu0 0.0
  %1059 = vmatprep.subr.mxu0 0.0
  %1060 = vmatpush2.msra.mxu0 0.0
  %1061 = vmatprep.subr.mxu0 0.0
  %1062 = vmatpush2.msra.mxu0 0.0
  %1063 = vmatprep.subr.mxu0 0.0
  %1064 = vmatpush2.msra.mxu0 0.0
  %1065 = vmatprep.subr.mxu0 0.0
  %1066 = vmatpush2.msra.mxu0 0.0
  %1067 = vmatprep.subr.mxu0 0.0
  %1068 = vmatpush2.msra.mxu0 0.0
  %1069 = vmatprep.mubr.f32.mxu0 0.0
  %1070 = vmatmul.mubr.f32.gmra.mxu0 %v994
  %v1071 = vpop.f32.mrf.mxu0
  %v1072 = vadd.f32 %v975, %v1071
  %v1073 = vpop.f32.mrf.mxu0
  %v1074 = vadd.f32 %v975, %v1073
  %1075 = vmatprep.mubr.f32.mxu0 0.0
  %1076 = vmatmul.mubr.f32.gmra.mxu0 %v997
  %v1077 = vpop.f32.mrf.mxu0
  %v1078 = vadd.f32 %v980, %v1077
  %v1079 = vpop.f32.mrf.mxu0
  %v1080 = vadd.f32 %v980, %v1079
  %1081 = vmatprep.mubr.f32.mxu0 0.0
  %1082 = vmatmul.mubr.f32.gmra.mxu0 %v1000
  %v1083 = vpop.f32.mrf.mxu0
  %v1084 = vadd.f32 %v985, %v1083
  %v1085 = vpop.f32.mrf.mxu0
  %v1086 = vadd.f32 %v985, %v1085
  %1087 = vmatprep.mubr.f32.mxu0 0.0
  %1088 = vmatmul.mubr.f32.gmra.mxu0 %v1003
  %v1089 = vpop.f32.mrf.mxu0
  %v1090 = vadd.f32 %v990, %v1089
  %v1091 = vpop.f32.mrf.mxu0
  %v1092 = vadd.f32 %v990, %v1091
  %1093 = vdwg.mxu0
  %v1094 = vadd.f32 %v1072, %v1074
  %1095 = vadd.xlane.f32.xlu0 %v1094
  %v1096 = vpop.xlane.xlu0 %1095
  %v1097 = vadd.f32 %v1078, %v1080
  %1098 = vadd.xlane.f32.xlu0 %v1097
  %v1099 = vpop.xlane.xlu0 %1098
  %v1100 = vadd.f32 %v1084, %v1086
  %1101 = vadd.xlane.f32.xlu0 %v1100
  %v1102 = vpop.xlane.xlu0 %1101
  %v1103 = vadd.f32 %v1090, %v1092
  %1104 = vadd.xlane.f32.xlu0 %v1103
  %v1105 = vpop.xlane.xlu0 %1104
  %v1106 = vadd.f32 %v1096, 0.0
  %v1107 = vadd.f32 %v1099, 0.0
  %v1108 = vadd.f32 %v1106, %v1102
  %v1109 = vadd.f32 %v1107, %v1105
  %v1110 = vmul.f32 %v1108, 0.001953125
  %v1111 = vmul.f32 %v1109, 0.001953125
  %1113 = vset.pattern.permute.xlu0 0
  %1114 = vperm.xlu0 %1113, %v1110
  %v1115 = vpop.permute.xlu0 %1114
  %1118 = vset.pattern.permute.xlu0 0
  %1119 = vperm.xlu0 %1118, %v1111
  %v1120 = vpop.permute.xlu0 %1119
  %v1122 = vsub.f32 %v1072, %v1115
  %v1123 = vsub.f32 %v1074, %v1115
  %v1124 = vsub.f32 %v1078, %v1120
  %v1125 = vsub.f32 %v1080, %v1120
  %v1126 = vsub.f32 %v1084, %v1115
  %v1127 = vsub.f32 %v1086, %v1115
  %v1128 = vsub.f32 %v1090, %v1120
  %v1129 = vsub.f32 %v1092, %v1120
  %v1130 = vmul.f32 %v1122, %v1122
  %v1131 = vmul.f32 %v1123, %v1123
  %v1132 = vmul.f32 %v1124, %v1124
  %v1133 = vmul.f32 %v1125, %v1125
  %v1134 = vmul.f32 %v1126, %v1126
  %v1135 = vmul.f32 %v1127, %v1127
  %v1136 = vmul.f32 %v1128, %v1128
  %v1137 = vmul.f32 %v1129, %v1129
  %v1138 = vadd.f32 %v1130, %v1131
  %1139 = vadd.xlane.f32.xlu0 %v1138
  %v1140 = vpop.xlane.xlu0 %1139
  %v1141 = vadd.f32 %v1132, %v1133
  %1142 = vadd.xlane.f32.xlu0 %v1141
  %v1143 = vpop.xlane.xlu0 %1142
  %v1144 = vadd.f32 %v1134, %v1135
  %1145 = vadd.xlane.f32.xlu0 %v1144
  %v1146 = vpop.xlane.xlu0 %1145
  %v1147 = vadd.f32 %v1136, %v1137
  %1148 = vadd.xlane.f32.xlu0 %v1147
  %v1149 = vpop.xlane.xlu0 %1148
  %v1150 = vadd.f32 %v1140, 0.0
  %v1151 = vadd.f32 %v1143, 0.0
  %v1152 = vadd.f32 %v1150, %v1146
  %v1153 = vadd.f32 %v1151, %v1149
  %v1154 = vmul.f32 %v1152, 0.001953125
  %v1155 = vmul.f32 %v1153, 0.001953125
  %v1156 = vld [vmem:[%s3] sm:$0xff]
  %v1157 = vld [vmem:[%s3 + $0x8] sm:$0xff]
  %v1158 = vadd.f32 %v1154, 1e-05
  %v1159 = vadd.f32 %v1155, 1e-05
  %v1160 = vrsqrt.pop %v1158
  %v1161 = vrsqrt.pop %v1159
  %v1162 = vmul.f32 %v1156, %v1160
  %v1163 = vmul.f32 %v1157, %v1161
  %v1164 = vld [vmem:[%s4] sm:$0xff]
  %v1165 = vld [vmem:[%s4 + $0x8] sm:$0xff]
  %1167 = vset.pattern.permute.xlu0 0
  %1168 = vperm.xlu0 %1167, %v1162
  %v1169 = vpop.permute.xlu0 %1168
  %1172 = vset.pattern.permute.xlu0 0
  %1173 = vperm.xlu0 %1172, %v1163
  %v1174 = vpop.permute.xlu0 %1173
  %v1176 = vmul.f32 %v1122, %v1169
  %v1177 = vmul.f32 %v1123, %v1169
  %v1178 = vmul.f32 %v1124, %v1174
  %v1179 = vmul.f32 %v1125, %v1174
  %v1180 = vmul.f32 %v1126, %v1169
  %v1181 = vmul.f32 %v1127, %v1169
  %v1182 = vmul.f32 %v1128, %v1174
  %v1183 = vmul.f32 %v1129, %v1174
  %1185 = vset.pattern.permute.xlu0 0
  %1186 = vperm.xlu0 %1185, %v1164
  %v1187 = vpop.permute.xlu0 %1186
  %1190 = vset.pattern.permute.xlu0 0
  %1191 = vperm.xlu0 %1190, %v1165
  %v1192 = vpop.permute.xlu0 %1191
  %v1194 = vadd.f32 %v1176, %v1187
  %v1195 = vadd.f32 %v1177, %v1187
  %v1196 = vadd.f32 %v1178, %v1192
  %v1197 = vadd.f32 %v1179, %v1192
  %v1198 = vadd.f32 %v1180, %v1187
  %v1199 = vadd.f32 %v1181, %v1187
  %v1200 = vadd.f32 %v1182, %v1192
  %v1201 = vadd.f32 %v1183, %v1192
  %v1202 = vmax.f32 %v1194, 0.0
  %v1203 = vmax.f32 %v1195, 0.0
  %v1204 = vmax.f32 %v1196, 0.0
  %v1205 = vmax.f32 %v1197, 0.0
  %v1206 = vmax.f32 %v1198, 0.0
  %v1207 = vmax.f32 %v1199, 0.0
  %v1208 = vmax.f32 %v1200, 0.0
  %v1209 = vmax.f32 %v1201, 0.0
  %v1210 = vld [vmem:[%s5] sm:$0xff]
  %v1211 = vld [vmem:[%s6] sm:$0xff]
  %1213 = vset.pattern.permute.xlu0 0
  %1214 = vperm.xlu0 %1213, %v1211
  %v1215 = vpop.permute.xlu0 %1214
  %v1218 = vsel %vm946, %v1210, 0
  %1220 = vmatprep.subr.mxu0 0.0
  %1221 = vmatpush1.msra.mxu0 0.0
  %1222 = vmatprep.subr.mxu0 0.0
  %1223 = vmatpush1.msra.mxu0 0.0
  %1224 = vmatprep.subr.mxu0 0.0
  %1225 = vmatpush1.msra.mxu0 0.0
  %1226 = vmatprep.subr.mxu0 0.0
  %1227 = vmatpush1.msra.mxu0 0.0
  %1228 = vmatprep.subr.mxu0 0.0
  %1229 = vmatpush1.msra.mxu0 0.0
  %1230 = vmatprep.subr.mxu0 0.0
  %1231 = vmatpush1.msra.mxu0 0.0
  %1232 = vmatprep.subr.mxu0 0.0
  %1233 = vmatpush1.msra.mxu0 0.0
  %1234 = vmatprep.subr.mxu0 0.0
  %1235 = vmatpush1.msra.mxu0 0.0
  %1236 = vmatprep.subr.mxu0 0.0
  %1237 = vmatpush1.msra.mxu0 0.0
  %1238 = vmatprep.subr.mxu0 0.0
  %1239 = vmatpush1.msra.mxu0 0.0
  %1240 = vmatprep.subr.mxu0 0.0
  %1241 = vmatpush1.msra.mxu0 0.0
  %1242 = vmatprep.subr.mxu0 0.0
  %1243 = vmatpush1.msra.mxu0 0.0
  %1244 = vmatprep.subr.mxu0 %v1209
  %1245 = vmatpush1.msra.mxu0 %v1208
  %1246 = vmatprep.subr.mxu0 %v1207
  %1247 = vmatpush1.msra.mxu0 %v1206
  %1248 = vmatprep.subr.mxu0 %v1205
  %1249 = vmatpush1.msra.mxu0 %v1204
  %1250 = vmatprep.subr.mxu0 %v1203
  %1251 = vmatpush1.msra.mxu0 %v1202
  %1252 = vmatprep.subr.mxu0 0.0
  %1253 = vmatpush2.msra.mxu0 0.0
  %1254 = vmatprep.subr.mxu0 0.0
  %1255 = vmatpush2.msra.mxu0 0.0
  %1256 = vmatprep.subr.mxu0 0.0
  %1257 = vmatpush2.msra.mxu0 0.0
  %1258 = vmatprep.subr.mxu0 0.0
  %1259 = vmatpush2.msra.mxu0 0.0
  %1260 = vmatprep.subr.mxu0 0.0
  %1261 = vmatpush2.msra.mxu0 0.0
  %1262 = vmatprep.subr.mxu0 0.0
  %1263 = vmatpush2.msra.mxu0 0.0
  %1264 = vmatprep.subr.mxu0 0.0
  %1265 = vmatpush2.msra.mxu0 0.0
  %1266 = vmatprep.subr.mxu0 0.0
  %1267 = vmatpush2.msra.mxu0 0.0
  %1268 = vmatprep.subr.mxu0 0.0
  %1269 = vmatpush2.msra.mxu0 0.0
  %1270 = vmatprep.subr.mxu0 0.0
  %1271 = vmatpush2.msra.mxu0 0.0
  %1272 = vmatprep.subr.mxu0 0.0
  %1273 = vmatpush2.msra.mxu0 0.0
  %1274 = vmatprep.subr.mxu0 0.0
  %1275 = vmatpush2.msra.mxu0 0.0
  %1276 = vmatprep.subr.mxu0 0.0
  %1277 = vmatpush2.msra.mxu0 0.0
  %1278 = vmatprep.subr.mxu0 0.0
  %1279 = vmatpush2.msra.mxu0 0.0
  %1280 = vmatprep.subr.mxu0 0.0
  %1281 = vmatpush2.msra.mxu0 0.0
  %1282 = vmatprep.subr.mxu0 0.0
  %1283 = vmatpush2.msra.mxu0 0.0
  %1284 = vmatprep.mubr.f32.mxu0 0.0
  %1285 = vmatmul.mubr.f32.gmra.mxu0 %v1218
  %v1286 = vpop.f32.mrf.mxu0
  %v1287 = vadd.f32 %v1215, %v1286
  %v1288 = vpop.f32.mrf.mxu0
  %v1289 = vadd.f32 %v1215, %v1288
  %1290 = vdwg.mxu0
  %1291 = vst [vmem:[%s8] sm:$0xff] %v1072
  %1292 = vst [vmem:[%s8 + $0x8] sm:$0xff] %v1074
  %1293 = vst [vmem:[%s8 + $0x10] sm:$0xff] %v1078
  %1294 = vst [vmem:[%s8 + $0x18] sm:$0xff] %v1080
  %1295 = vst [vmem:[%s8 + $0x20] sm:$0xff] %v1084
  %1296 = vst [vmem:[%s8 + $0x28] sm:$0xff] %v1086
  %1297 = vst [vmem:[%s8 + $0x30] sm:$0xff] %v1090
  %1298 = vst [vmem:[%s8 + $0x38] sm:$0xff] %v1092
  %1299 = vst [vmem:[%s7] sm:$0xff] %v1287
  %1300 = vst [vmem:[%s7 + $0x8] sm:$0xff] %v1289
  // Predicated region
  $region30: #{mscnn_forward.1} parent=0 // pred_check
    _
  $region31: #{mscnn_forward.1} parent=0 // pred_check_branch
    %1302 = sbr.rel (0) target = $region33
  $region32: #{mscnn_forward.1} parent=0 // pred_region
    _
  $region33: #{mscnn_forward.1} parent=0 // pred_fallthru
    _
  // Predicated region
  $region34: #{mscnn_forward.1} parent=0 // pred_check
    _
  $region35: #{mscnn_forward.1} parent=0 // pred_check_branch
    %1304 = sbr.rel (0) target = $region37
  $region36: #{mscnn_forward.1} parent=0 // pred_region
    _
  $region37: #{mscnn_forward.1} parent=0 // pred_fallthru
    _
  // Predicated region
  $region38: #{mscnn_forward.1} parent=0 // pred_check
    _
  $region39: #{mscnn_forward.1} parent=0 // pred_check_branch
    %1306 = sbr.rel (0) target = $region41
  $region40: #{mscnn_forward.1} parent=0 // pred_region
    _
  $region41: #{mscnn_forward.1} parent=0 // pred_fallthru
    _
  // Predicated region
  $region42: #{mscnn_forward.1} parent=0 // pred_check
    _
  $region43: #{mscnn_forward.1} parent=0 // pred_check_branch
    %1308 = sbr.rel (0) target = $region45
  $region44: #{mscnn_forward.1} parent=0 // pred_region
    _
  $region45: #{mscnn_forward.1} parent=0 // pred_fallthru
    _

</llo_original>
